<compile_context>
chip_gen: v7x
topology: tpu7x:2x2x1
jax: 0.10.0
libtpu: 0.0.40
codegen_flags: <defaults>
</compile_context>

<pallas_src>
import numpy as np
import jax
import jax.numpy as jnp
from jax.experimental import pallas as pl
from jax.experimental.pallas import tpu as pltpu

NODES_PER_GRAPH = 8
NUM_GRAPHS = 2
N = NODES_PER_GRAPH * NUM_GRAPHS            # 16 nodes
EDGES = 2 * NODES_PER_GRAPH * NUM_GRAPHS    # 32 directed edges (bidirectional ring)
COORD_DIM = 3
HID = 16
NUM_CLASSES = 2
BN_EPS = 1e-5
ELU_ALPHA = 0.1
LANES = 128

# -------------------- packed operand layouts ---------------------------------
# Geometry slab: (G_ROWS, 128) f32, built once on host from edge_index.
#   rows [0:EDGES)        : s_row [0:16], s_col [16:32], s_diff [32:48]
#   rows [EDGES:EDGES+N)  : scat_sum [0:32], scat_mean [32:64], (I+adj) [64:80]
G_ROWS = EDGES + N                          # 48

# Parameter slab: (P_ROWS, 128) f32.
#   name -> (row, col, nrows, ncols); fused weights pre-concatenated on host.
PARAM_SLOTS = {
    # band 0: rows 0..15
    "e1_We2":   (0,   0, 16, 16),
    "e1_Wc1":   (0,  16, 16, 16),
    "e1_Wn1":   (0,  32, 16, 16),
    "e1_Wn2":   (0,  48, 16, 16),
    "e2_We2":   (0,  64, 16, 16),
    "e2_Wn2":   (0,  80, 16, 16),
    "e2_We1st": (0,  96, 16, 32),   # [We1s | We1t]
    # band 1: rows 16..31
    "g1_W1f":   (16,  0, 16, 16),
    "g1_W2":    (16, 16, 16, 16),
    "g2_W1f":   (16, 32, 16, 16),
    "g2_W2":    (16, 48, 16, 16),
    "c_W2pad":  (16, 64, 16, 16),   # Linear(16, C) lane-padded to 16
    # band 2: rows 32..63 (tall, fused vertical stacks)
    "e2_Wn1v":  (32,  0, 32, 16),   # vstack([Wn1x, Wn1a])
    "c_W1mxv":  (32, 16, 32, 16),   # vstack([c_W1m, c_W1x])
}
BIAS_ROW0 = 64                      # rows 64..82: one (1,16) row param each
BIAS_NAMES = (
    "e1_We1", "e1_be1", "e1_be2", "e1_bn1", "e1_bn2", "e1_bc1", "e1_Wc2",
    "e2_We1r", "e2_be1", "e2_be2", "e2_bn1", "e2_bn2",
    "g1_b1f", "g1_b2", "g2_b1f", "g2_b2",
    "c_W1s", "c_b1", "c_b2pad",
)
P_ROWS = 88                         # 83 used rows, padded to multiple of 8

# raw (un-packed) parameter names, matching the PyTorch module
PARAM_NAMES = (
    # equiv  = E_GCL(0, 16, 16, tanh=False, residual=False)  (h is None)
    "e1_We1", "e1_be1", "e1_We2", "e1_be2",
    "e1_Wn1", "e1_bn1", "e1_Wn2", "e1_bn2",
    "e1_Wc1", "e1_bc1", "e1_Wc2",
    # equiv2 = E_GCL(16, 16, 16, tanh=False)  (residual=True)
    "e2_We1s", "e2_We1t", "e2_We1r", "e2_be1", "e2_We2", "e2_be2",
    "e2_Wn1x", "e2_Wn1a", "e2_bn1", "e2_Wn2", "e2_bn2",
    "e2_Wc1", "e2_bc1", "e2_Wc2",
    # gin / gin2 : GINConv(eps=0) with MLP = Linear-BN-ReLU-Linear
    "g1_W1", "g1_b1", "g1_gamma", "g1_beta", "g1_mean", "g1_var", "g1_W2", "g1_b2",
    "g2_W1", "g2_b1", "g2_gamma", "g2_beta", "g2_mean", "g2_var", "g2_W2", "g2_b2",
    # classifier: [Dropout] Linear(33,16) ELU(0.1) [Dropout] Linear(16,C) Softmax
    "c_W1m", "c_W1x", "c_W1s", "c_b1", "c_W2", "c_b2",
)


def _silu(x):
    return x * (1.0 / (1.0 + jnp.exp(-x)))


def _elu(x, alpha):
    return jnp.where(x > 0, x, alpha * (jnp.exp(jnp.minimum(x, 0.0)) - 1.0))


def _dot(a, b):
    return jnp.dot(a, b, preferred_element_type=jnp.float32)


# ------------------------------- kernel ---------------------------------------
def equiv_nophys_kernel(x_ref, seg_ref, g_ref, p_ref, out_ref):
    P = p_ref[...]                       # (P_ROWS, 128) parameter slab
    G = g_ref[...]                       # (G_ROWS, 128) graph-structure slab

    def W(name):                         # static value slices: zero-DMA extraction
        r, c, h, w = PARAM_SLOTS[name]
        return P[r:r + h, c:c + w]

    def B(name):
        r = BIAS_ROW0 + BIAS_NAMES.index(name)
        return P[r:r + 1, 0:HID]         # (1, 16)

    s_row = G[0:EDGES, 0:HID]                       # (E, N) one-hot of edge_index[0]
    s_col = G[0:EDGES, HID:2 * HID]                 # (E, N) one-hot of edge_index[1]
    s_diff = G[0:EDGES, 2 * HID:3 * HID]            # (E, N) s_row - s_col
    scat_sum = G[EDGES:EDGES + N, 0:EDGES]          # (N, E) segment-sum  (= s_row.T)
    scat_mean = G[EDGES:EDGES + N, EDGES:2 * EDGES]  # (N, E) segment-mean (s_row.T / cnt)
    adj_eye = G[EDGES:EDGES + N, 2 * EDGES:2 * EDGES + N]  # (N, N) I + s_col.T @ s_row

    coord = x_ref[...]                   # (N, 3)
    seg = seg_ref[...]                   # (G, 1)

    # ---------------- equiv : E_GCL(0,16,16), h=None, residual=False --------
    cdiff = _dot(s_diff, coord)                                   # (E, 3)
    radial = jnp.sum(cdiff * cdiff, axis=-1, keepdims=True)       # (E, 1)
    m = _silu(radial * B("e1_We1") + B("e1_be1"))                 # Linear(1,16)
    m = _silu(_dot(m, W("e1_We2")) + B("e1_be2"))
    c = _silu(_dot(m, W("e1_Wc1")) + B("e1_bc1"))
    cw = jnp.sum(c * B("e1_Wc2"), axis=-1, keepdims=True)         # Linear(16,1, no bias)
    coord = coord + _dot(scat_mean, cdiff * cw)                   # coords_agg='mean'
    agg = _dot(scat_sum, m)
    t = _silu(_dot(agg, W("e1_Wn1")) + B("e1_bn1"))
    h = _dot(t, W("e1_Wn2")) + B("e1_bn2")                        # no residual

    # ---------------- equiv2 : E_GCL(16,16,16), residual=True ---------------
    cdiff = _dot(s_diff, coord)
    radial = jnp.sum(cdiff * cdiff, axis=-1, keepdims=True)
    hst = _dot(h, W("e2_We1st"))                                  # (N,32) = [h@We1s | h@We1t]
    m = _silu(_dot(s_row, hst[:, 0:HID]) + _dot(s_col, hst[:, HID:2 * HID])
              + radial * B("e2_We1r") + B("e2_be1"))              # Linear(33,16) split
    m = _silu(_dot(m, W("e2_We2")) + B("e2_be2"))
    # coordinate update of this layer is dead code (its pos is discarded)
    agg = _dot(scat_sum, m)
    t = _silu(_dot(jnp.concatenate([h, agg], axis=-1), W("e2_Wn1v")) + B("e2_bn1"))
    h = h + _dot(t, W("e2_Wn2")) + B("e2_bn2")                    # residual

    # ---------------- gin / gin2 : GINConv(eps=0) + F.elu(alpha=0.1) --------
    # BatchNorm1d (eval mode) folded into W1/b1; (1+eps)*h_i + sum_j h_j = (I+adj) @ h
    for g in ("g1", "g2"):
        z = _dot(adj_eye, h)
        z = jnp.maximum(_dot(z, W(g + "_W1f")) + B(g + "_b1f"), 0.0)
        z = _dot(z, W(g + "_W2")) + B(g + "_b2")
        h = _elu(z, ELU_ALPHA)

    # ---------------- global mean / max pooling -----------------------------
    # batch assigns NODES_PER_GRAPH contiguous nodes per graph (as in the driver);
    # static sublane slices avoid a reshape relayout.
    means, maxs = [], []
    for gi in range(NUM_GRAPHS):
        blk = h[gi * NODES_PER_GRAPH:(gi + 1) * NODES_PER_GRAPH, :]
        means.append(jnp.sum(blk, axis=0, keepdims=True) * (1.0 / NODES_PER_GRAPH))
        maxs.append(jnp.max(blk, axis=0, keepdims=True))
    x1 = jnp.concatenate(means, axis=0)                           # (G,16) global_mean_pool
    x2 = jnp.concatenate(maxs, axis=0)                            # (G,16) global_max_pool

    # ---------------- classifier (Dropout = identity in eval) ---------------
    z = (_dot(jnp.concatenate([x1, x2], axis=-1), W("c_W1mxv"))
         + seg * B("c_W1s") + B("c_b1"))                          # Linear(2*16+1, 16) split
    z = _elu(z, ELU_ALPHA)
    z = _dot(z, W("c_W2pad")) + B("c_b2pad")                      # Linear(16,C), lane-padded
    logits = z[:, 0:NUM_CLASSES]
    logits = logits - jnp.max(logits, axis=-1, keepdims=True)     # Softmax(dim=1)
    ez = jnp.exp(logits)
    out_ref[...] = ez / jnp.sum(ez, axis=-1, keepdims=True)


# --------------------- one-time host-side packing (off the hot path) ----------
def build_graph_constants(edge_index, batch=None):
    """numpy, executed ONCE per graph topology; returns the (G_ROWS,128) slab."""
    ei = np.asarray(edge_index)
    row, col = ei[0], ei[1]
    assert row.shape[0] == EDGES
    s_row = np.zeros((EDGES, N), np.float32)
    s_col = np.zeros((EDGES, N), np.float32)
    s_row[np.arange(EDGES), row] = 1.0
    s_col[np.arange(EDGES), col] = 1.0
    s_diff = s_row - s_col
    cnt = np.maximum(s_row.sum(axis=0), 1.0)                       # edges per row-node
    scat_sum = s_row.T                                             # (N,E) segment-sum
    scat_mean = scat_sum / cnt[:, None]                            # (N,E) segment-mean
    adj_eye = np.eye(N, dtype=np.float32) + s_col.T @ s_row        # I + GIN adjacency

    g = np.zeros((G_ROWS, LANES), np.float32)
    g[0:EDGES, 0:HID] = s_row
    g[0:EDGES, HID:2 * HID] = s_col
    g[0:EDGES, 2 * HID:3 * HID] = s_diff
    g[EDGES:EDGES + N, 0:EDGES] = scat_sum
    g[EDGES:EDGES + N, EDGES:2 * EDGES] = scat_mean
    g[EDGES:EDGES + N, 2 * EDGES:2 * EDGES + N] = adj_eye
    return jnp.asarray(g)


def pack_params(params):
    """numpy, executed ONCE per parameter set; returns the (P_ROWS,128) slab."""
    p = {k: np.asarray(v, np.float32) for k, v in params.items()}

    def bn_fold(prefix):                 # eval-mode BN folded into preceding Linear
        scale = p[prefix + "_gamma"] / np.sqrt(p[prefix + "_var"] + BN_EPS)    # (1,16)
        w1f = p[prefix + "_W1"] * scale
        b1f = (p[prefix + "_b1"] - p[prefix + "_mean"]) * scale + p[prefix + "_beta"]
        return w1f, b1f

    g1_W1f, g1_b1f = bn_fold("g1")
    g2_W1f, g2_b1f = bn_fold("g2")
    pad = HID - NUM_CLASSES

    mats = {
        "e1_We2": p["e1_We2"], "e1_Wc1": p["e1_Wc1"],
        "e1_Wn1": p["e1_Wn1"], "e1_Wn2": p["e1_Wn2"],
        "e2_We1st": np.concatenate([p["e2_We1s"], p["e2_We1t"]], axis=1),
        "e2_We2": p["e2_We2"],
        "e2_Wn1v": np.concatenate([p["e2_Wn1x"], p["e2_Wn1a"]], axis=0),
        "e2_Wn2": p["e2_Wn2"],
        "g1_W1f": g1_W1f, "g1_W2": p["g1_W2"],
        "g2_W1f": g2_W1f, "g2_W2": p["g2_W2"],
        "c_W1mxv": np.concatenate([p["c_W1m"], p["c_W1x"]], axis=0),
        "c_W2pad": np.pad(p["c_W2"], ((0, 0), (0, pad))),
    }
    rows = {
        "e1_We1": p["e1_We1"], "e1_be1": p["e1_be1"], "e1_be2": p["e1_be2"],
        "e1_bn1": p["e1_bn1"], "e1_bn2": p["e1_bn2"], "e1_bc1": p["e1_bc1"],
        "e1_Wc2": p["e1_Wc2"],
        "e2_We1r": p["e2_We1r"], "e2_be1": p["e2_be1"], "e2_be2": p["e2_be2"],
        "e2_bn1": p["e2_bn1"], "e2_bn2": p["e2_bn2"],
        "g1_b1f": g1_b1f, "g1_b2": p["g1_b2"],
        "g2_b1f": g2_b1f, "g2_b2": p["g2_b2"],
        "c_W1s": p["c_W1s"], "c_b1": p["c_b1"],
        "c_b2pad": np.pad(p["c_b2"], ((0, 0), (0, pad))),
    }

    slab = np.zeros((P_ROWS, LANES), np.float32)
    for name, (r, c, h, w) in PARAM_SLOTS.items():
        m = mats[name]
        assert m.shape == (h, w), (name, m.shape)
        slab[r:r + h, c:c + w] = m
    for i, name in enumerate(BIAS_NAMES):
        slab[BIAS_ROW0 + i, 0:HID] = rows[name].reshape(HID)
    return jnp.asarray(slab)


# ------------------------------- wrapper ---------------------------------------
def equiv_nophys_forward(x, segment2d, graph_const, param_slab):
    """x: (N,3) f32, segment2d: (G,1) f32, graph_const: (48,128), param_slab: (88,128)."""
    return pl.pallas_call(
        equiv_nophys_kernel,
        out_shape=jax.ShapeDtypeStruct((NUM_GRAPHS, NUM_CLASSES), jnp.float32),
        in_specs=[pl.BlockSpec(memory_space=pltpu.MemorySpace.VMEM)] * 4,
        out_specs=pl.BlockSpec(memory_space=pltpu.MemorySpace.VMEM),
        cost_estimate=pl.CostEstimate(flops=250_000, transcendentals=6_000,
                                      bytes_accessed=80_000),
    )(x.astype(jnp.float32), segment2d.astype(jnp.float32), graph_const, param_slab)


def equiv_nophys_apply(x, edge_index, batch, segment, params):
    """Convenience wrapper matching the PyTorch forward signature (host prep is
    re-done per call; prefer pre-packing as in __main__ for hot loops)."""
    graph_const = build_graph_constants(edge_index, batch)
    param_slab = pack_params(params)
    seg2d = jnp.reshape(jnp.asarray(segment, jnp.float32), (NUM_GRAPHS, 1))
    return equiv_nophys_forward(jnp.asarray(x, jnp.float32), seg2d, graph_const, param_slab)


def init_params(key):
    shapes = {
        "e1_We1": (1, HID), "e1_be1": (1, HID), "e1_We2": (HID, HID), "e1_be2": (1, HID),
        "e1_Wn1": (HID, HID), "e1_bn1": (1, HID), "e1_Wn2": (HID, HID), "e1_bn2": (1, HID),
        "e1_Wc1": (HID, HID), "e1_bc1": (1, HID), "e1_Wc2": (1, HID),
        "e2_We1s": (HID, HID), "e2_We1t": (HID, HID), "e2_We1r": (1, HID), "e2_be1": (1, HID),
        "e2_We2": (HID, HID), "e2_be2": (1, HID),
        "e2_Wn1x": (HID, HID), "e2_Wn1a": (HID, HID), "e2_bn1": (1, HID),
        "e2_Wn2": (HID, HID), "e2_bn2": (1, HID),
        "e2_Wc1": (HID, HID), "e2_bc1": (1, HID), "e2_Wc2": (1, HID),
        "g1_W1": (HID, HID), "g1_b1": (1, HID), "g1_W2": (HID, HID), "g1_b2": (1, HID),
        "g2_W1": (HID, HID), "g2_b1": (1, HID), "g2_W2": (HID, HID), "g2_b2": (1, HID),
        "c_W1m": (HID, HID), "c_W1x": (HID, HID), "c_W1s": (1, HID), "c_b1": (1, HID),
        "c_W2": (HID, NUM_CLASSES), "c_b2": (1, NUM_CLASSES),
    }
    keys = jax.random.split(key, len(PARAM_NAMES))
    params = {}
    for i, name in enumerate(PARAM_NAMES):
        if name.endswith(("_gamma", "_var")):
            params[name] = jnp.ones((1, HID), dtype=jnp.float32)       # BN defaults
        elif name.endswith(("_beta", "_mean")):
            params[name] = jnp.zeros((1, HID), dtype=jnp.float32)
        else:
            params[name] = (0.2 * jax.random.normal(keys[i], shapes[name])
                            ).astype(jnp.float32)
    return params


if __name__ == "__main__":
    key = jax.random.PRNGKey(0)
    k_x, k_seg, k_params = jax.random.split(key, 3)

    # node coordinates (the module's `x` is fed to E_GCL as coordinates)
    x = jax.random.normal(k_x, (N, COORD_DIM), dtype=jnp.float32)

    # bidirectional ring inside each graph -> E = 2 * NODES_PER_GRAPH * NUM_GRAPHS = 32
    rows, cols = [], []
    for g in range(NUM_GRAPHS):
        off = g * NODES_PER_GRAPH
        for i in range(NODES_PER_GRAPH):
            j = (i + 1) % NODES_PER_GRAPH
            rows += [off + i, off + j]
            cols += [off + j, off + i]
    edge_index = np.array([rows, cols], dtype=np.int32)                # (2, 32)
    batch = np.repeat(np.arange(NUM_GRAPHS, dtype=np.int32), NODES_PER_GRAPH)   # (16,)
    segment = jax.random.normal(k_seg, (NUM_GRAPHS,), dtype=jnp.float32)        # (2,)

    params = init_params(k_params)

    # one-time host-side packing (static topology / static parameters): the
    # jitted per-call path contains only the pallas_call itself.
    graph_const = build_graph_constants(edge_index, batch)
    param_slab = pack_params(params)
    seg2d = jnp.reshape(segment, (NUM_GRAPHS, 1)).astype(jnp.float32)

    fwd = jax.jit(equiv_nophys_forward)
    out = fwd(x, seg2d, graph_const, param_slab)
    out = jax.block_until_ready(out)

    assert out.shape == (NUM_GRAPHS, NUM_CLASSES)
    assert bool(jnp.all(jnp.isfinite(out)))
    assert bool(jnp.allclose(jnp.sum(out, axis=-1), 1.0, atol=1e-5))   # softmax rows
    print("KERNEL_OK")
</pallas_src>

<mosaic_0001>
module attributes {stable_mosaic.version = 11 : i64} {
  func.func @equiv_nophys_kernel(%arg0: memref<16x3xf32, #tpu.memory_space<vmem>>, %arg1: memref<2x1xf32, #tpu.memory_space<vmem>>, %arg2: memref<48x128xf32, #tpu.memory_space<vmem>>, %arg3: memref<88x128xf32, #tpu.memory_space<vmem>>, %arg4: memref<2x2xf32, #tpu.memory_space<vmem>>) attributes {dimension_semantics = [], scalar_prefetch = 0 : i64, scratch_operands = 0 : i64, tpu.core_type = #tpu.core_type<tc>} {
    %c0 = arith.constant 0 : index
    %c0_0 = arith.constant 0 : index
    %0 = vector.load %arg3[%c0, %c0_0] : memref<88x128xf32, #tpu.memory_space<vmem>>, vector<88x128xf32>
    %c0_1 = arith.constant 0 : index
    %c0_2 = arith.constant 0 : index
    %1 = vector.load %arg2[%c0_1, %c0_2] : memref<48x128xf32, #tpu.memory_space<vmem>>, vector<48x128xf32>
    %2 = vector.extract_strided_slice %1 {offsets = [0, 0], sizes = [32, 16], strides = [1, 1]} : vector<48x128xf32> to vector<32x16xf32>
    %3 = vector.extract_strided_slice %1 {offsets = [0, 16], sizes = [32, 16], strides = [1, 1]} : vector<48x128xf32> to vector<32x16xf32>
    %4 = vector.extract_strided_slice %1 {offsets = [0, 32], sizes = [32, 16], strides = [1, 1]} : vector<48x128xf32> to vector<32x16xf32>
    %5 = vector.extract_strided_slice %1 {offsets = [32, 0], sizes = [16, 32], strides = [1, 1]} : vector<48x128xf32> to vector<16x32xf32>
    %6 = vector.extract_strided_slice %1 {offsets = [32, 32], sizes = [16, 32], strides = [1, 1]} : vector<48x128xf32> to vector<16x32xf32>
    %7 = vector.extract_strided_slice %1 {offsets = [32, 64], sizes = [16, 16], strides = [1, 1]} : vector<48x128xf32> to vector<16x16xf32>
    %c0_3 = arith.constant 0 : index
    %c0_4 = arith.constant 0 : index
    %8 = vector.load %arg0[%c0_3, %c0_4] : memref<16x3xf32, #tpu.memory_space<vmem>>, vector<16x3xf32>
    %c0_5 = arith.constant 0 : index
    %c0_6 = arith.constant 0 : index
    %9 = vector.load %arg1[%c0_5, %c0_6] : memref<2x1xf32, #tpu.memory_space<vmem>>, vector<2x1xf32>
    %cst = arith.constant dense<0.000000e+00> : vector<32x3xf32>
    %10 = tpu.matmul %4, %8, %cst {dimension_numbers = #tpu.dot_dimension_numbers<[1], [0], [0], [1], [0, 0, 1, 1], [], []>} : vector<32x16xf32>, vector<16x3xf32>, vector<32x3xf32> -> vector<32x3xf32>
    %11 = arith.mulf %10, %10 : vector<32x3xf32>
    %cst_7 = arith.constant dense<0.000000e+00> : vector<32xf32>
    %12 = vector.multi_reduction <add>, %11, %cst_7 [1] : vector<32x3xf32> to vector<32xf32>
    %13 = vector.shape_cast %12 : vector<32xf32> to vector<32x1xf32>
    %14 = vector.extract_strided_slice %0 {offsets = [64, 0], sizes = [1, 16], strides = [1, 1]} : vector<88x128xf32> to vector<1x16xf32>
    %15 = vector.broadcast %13 : vector<32x1xf32> to vector<32x16xf32>
    %16 = vector.broadcast %14 : vector<1x16xf32> to vector<32x16xf32>
    %17 = arith.mulf %15, %16 : vector<32x16xf32>
    %18 = vector.extract_strided_slice %0 {offsets = [65, 0], sizes = [1, 16], strides = [1, 1]} : vector<88x128xf32> to vector<1x16xf32>
    %19 = vector.broadcast %18 : vector<1x16xf32> to vector<32x16xf32>
    %20 = arith.addf %17, %19 : vector<32x16xf32>
    %cst_8 = arith.constant 0.000000e+00 : f32
    %21 = vector.broadcast %cst_8 : f32 to vector<32x16xf32>
    %22 = arith.subf %21, %20 : vector<32x16xf32>
    %23 = math.exp %22 : vector<32x16xf32>
    %cst_9 = arith.constant 1.000000e+00 : f32
    %24 = vector.broadcast %cst_9 : f32 to vector<32x16xf32>
    %25 = arith.addf %24, %23 : vector<32x16xf32>
    %cst_10 = arith.constant 1.000000e+00 : f32
    %26 = vector.broadcast %cst_10 : f32 to vector<32x16xf32>
    %27 = arith.divf %26, %25 : vector<32x16xf32>
    %28 = arith.mulf %20, %27 : vector<32x16xf32>
    %29 = vector.extract_strided_slice %0 {offsets = [0, 0], sizes = [16, 16], strides = [1, 1]} : vector<88x128xf32> to vector<16x16xf32>
    %cst_11 = arith.constant dense<0.000000e+00> : vector<32x16xf32>
    %30 = tpu.matmul %28, %29, %cst_11 {dimension_numbers = #tpu.dot_dimension_numbers<[1], [0], [0], [1], [0, 0, 1, 1], [], []>} : vector<32x16xf32>, vector<16x16xf32>, vector<32x16xf32> -> vector<32x16xf32>
    %31 = vector.extract_strided_slice %0 {offsets = [66, 0], sizes = [1, 16], strides = [1, 1]} : vector<88x128xf32> to vector<1x16xf32>
    %32 = vector.broadcast %31 : vector<1x16xf32> to vector<32x16xf32>
    %33 = arith.addf %30, %32 : vector<32x16xf32>
    %cst_12 = arith.constant 0.000000e+00 : f32
    %34 = vector.broadcast %cst_12 : f32 to vector<32x16xf32>
    %35 = arith.subf %34, %33 : vector<32x16xf32>
    %36 = math.exp %35 : vector<32x16xf32>
    %cst_13 = arith.constant 1.000000e+00 : f32
    %37 = vector.broadcast %cst_13 : f32 to vector<32x16xf32>
    %38 = arith.addf %37, %36 : vector<32x16xf32>
    %cst_14 = arith.constant 1.000000e+00 : f32
    %39 = vector.broadcast %cst_14 : f32 to vector<32x16xf32>
    %40 = arith.divf %39, %38 : vector<32x16xf32>
    %41 = arith.mulf %33, %40 : vector<32x16xf32>
    %42 = vector.extract_strided_slice %0 {offsets = [0, 16], sizes = [16, 16], strides = [1, 1]} : vector<88x128xf32> to vector<16x16xf32>
    %cst_15 = arith.constant dense<0.000000e+00> : vector<32x16xf32>
    %43 = tpu.matmul %41, %42, %cst_15 {dimension_numbers = #tpu.dot_dimension_numbers<[1], [0], [0], [1], [0, 0, 1, 1], [], []>} : vector<32x16xf32>, vector<16x16xf32>, vector<32x16xf32> -> vector<32x16xf32>
    %44 = vector.extract_strided_slice %0 {offsets = [69, 0], sizes = [1, 16], strides = [1, 1]} : vector<88x128xf32> to vector<1x16xf32>
    %45 = vector.broadcast %44 : vector<1x16xf32> to vector<32x16xf32>
    %46 = arith.addf %43, %45 : vector<32x16xf32>
    %cst_16 = arith.constant 0.000000e+00 : f32
    %47 = vector.broadcast %cst_16 : f32 to vector<32x16xf32>
    %48 = arith.subf %47, %46 : vector<32x16xf32>
    %49 = math.exp %48 : vector<32x16xf32>
    %cst_17 = arith.constant 1.000000e+00 : f32
    %50 = vector.broadcast %cst_17 : f32 to vector<32x16xf32>
    %51 = arith.addf %50, %49 : vector<32x16xf32>
    %cst_18 = arith.constant 1.000000e+00 : f32
    %52 = vector.broadcast %cst_18 : f32 to vector<32x16xf32>
    %53 = arith.divf %52, %51 : vector<32x16xf32>
    %54 = arith.mulf %46, %53 : vector<32x16xf32>
    %55 = vector.extract_strided_slice %0 {offsets = [70, 0], sizes = [1, 16], strides = [1, 1]} : vector<88x128xf32> to vector<1x16xf32>
    %56 = vector.broadcast %55 : vector<1x16xf32> to vector<32x16xf32>
    %57 = arith.mulf %54, %56 : vector<32x16xf32>
    %cst_19 = arith.constant dense<0.000000e+00> : vector<32xf32>
    %58 = vector.multi_reduction <add>, %57, %cst_19 [1] : vector<32x16xf32> to vector<32xf32>
    %59 = vector.shape_cast %58 : vector<32xf32> to vector<32x1xf32>
    %60 = vector.broadcast %59 : vector<32x1xf32> to vector<32x3xf32>
    %61 = arith.mulf %10, %60 : vector<32x3xf32>
    %cst_20 = arith.constant dense<0.000000e+00> : vector<16x3xf32>
    %62 = tpu.matmul %6, %61, %cst_20 {dimension_numbers = #tpu.dot_dimension_numbers<[1], [0], [0], [1], [0, 0, 1, 1], [], []>} : vector<16x32xf32>, vector<32x3xf32>, vector<16x3xf32> -> vector<16x3xf32>
    %63 = arith.addf %8, %62 : vector<16x3xf32>
    %cst_21 = arith.constant dense<0.000000e+00> : vector<16x16xf32>
    %64 = tpu.matmul %5, %41, %cst_21 {dimension_numbers = #tpu.dot_dimension_numbers<[1], [0], [0], [1], [0, 0, 1, 1], [], []>} : vector<16x32xf32>, vector<32x16xf32>, vector<16x16xf32> -> vector<16x16xf32>
    %65 = vector.extract_strided_slice %0 {offsets = [0, 32], sizes = [16, 16], strides = [1, 1]} : vector<88x128xf32> to vector<16x16xf32>
    %cst_22 = arith.constant dense<0.000000e+00> : vector<16x16xf32>
    %66 = tpu.matmul %64, %65, %cst_22 {dimension_numbers = #tpu.dot_dimension_numbers<[1], [0], [0], [1], [0, 0, 1, 1], [], []>} : vector<16x16xf32>, vector<16x16xf32>, vector<16x16xf32> -> vector<16x16xf32>
    %67 = vector.extract_strided_slice %0 {offsets = [67, 0], sizes = [1, 16], strides = [1, 1]} : vector<88x128xf32> to vector<1x16xf32>
    %68 = vector.broadcast %67 : vector<1x16xf32> to vector<16x16xf32>
    %69 = arith.addf %66, %68 : vector<16x16xf32>
    %cst_23 = arith.constant 0.000000e+00 : f32
    %70 = vector.broadcast %cst_23 : f32 to vector<16x16xf32>
    %71 = arith.subf %70, %69 : vector<16x16xf32>
    %72 = math.exp %71 : vector<16x16xf32>
    %cst_24 = arith.constant 1.000000e+00 : f32
    %73 = vector.broadcast %cst_24 : f32 to vector<16x16xf32>
    %74 = arith.addf %73, %72 : vector<16x16xf32>
    %cst_25 = arith.constant 1.000000e+00 : f32
    %75 = vector.broadcast %cst_25 : f32 to vector<16x16xf32>
    %76 = arith.divf %75, %74 : vector<16x16xf32>
    %77 = arith.mulf %69, %76 : vector<16x16xf32>
    %78 = vector.extract_strided_slice %0 {offsets = [0, 48], sizes = [16, 16], strides = [1, 1]} : vector<88x128xf32> to vector<16x16xf32>
    %cst_26 = arith.constant dense<0.000000e+00> : vector<16x16xf32>
    %79 = tpu.matmul %77, %78, %cst_26 {dimension_numbers = #tpu.dot_dimension_numbers<[1], [0], [0], [1], [0, 0, 1, 1], [], []>} : vector<16x16xf32>, vector<16x16xf32>, vector<16x16xf32> -> vector<16x16xf32>
    %80 = vector.extract_strided_slice %0 {offsets = [68, 0], sizes = [1, 16], strides = [1, 1]} : vector<88x128xf32> to vector<1x16xf32>
    %81 = vector.broadcast %80 : vector<1x16xf32> to vector<16x16xf32>
    %82 = arith.addf %79, %81 : vector<16x16xf32>
    %cst_27 = arith.constant dense<0.000000e+00> : vector<32x3xf32>
    %83 = tpu.matmul %4, %63, %cst_27 {dimension_numbers = #tpu.dot_dimension_numbers<[1], [0], [0], [1], [0, 0, 1, 1], [], []>} : vector<32x16xf32>, vector<16x3xf32>, vector<32x3xf32> -> vector<32x3xf32>
    %84 = arith.mulf %83, %83 : vector<32x3xf32>
    %cst_28 = arith.constant dense<0.000000e+00> : vector<32xf32>
    %85 = vector.multi_reduction <add>, %84, %cst_28 [1] : vector<32x3xf32> to vector<32xf32>
    %86 = vector.shape_cast %85 : vector<32xf32> to vector<32x1xf32>
    %87 = vector.extract_strided_slice %0 {offsets = [0, 96], sizes = [16, 32], strides = [1, 1]} : vector<88x128xf32> to vector<16x32xf32>
    %cst_29 = arith.constant dense<0.000000e+00> : vector<16x32xf32>
    %88 = tpu.matmul %82, %87, %cst_29 {dimension_numbers = #tpu.dot_dimension_numbers<[1], [0], [0], [1], [0, 0, 1, 1], [], []>} : vector<16x16xf32>, vector<16x32xf32>, vector<16x32xf32> -> vector<16x32xf32>
    %89 = vector.extract_strided_slice %88 {offsets = [0, 0], sizes = [16, 16], strides = [1, 1]} : vector<16x32xf32> to vector<16x16xf32>
    %cst_30 = arith.constant dense<0.000000e+00> : vector<32x16xf32>
    %90 = tpu.matmul %2, %89, %cst_30 {dimension_numbers = #tpu.dot_dimension_numbers<[1], [0], [0], [1], [0, 0, 1, 1], [], []>} : vector<32x16xf32>, vector<16x16xf32>, vector<32x16xf32> -> vector<32x16xf32>
    %91 = vector.extract_strided_slice %88 {offsets = [0, 16], sizes = [16, 16], strides = [1, 1]} : vector<16x32xf32> to vector<16x16xf32>
    %cst_31 = arith.constant dense<0.000000e+00> : vector<32x16xf32>
    %92 = tpu.matmul %3, %91, %cst_31 {dimension_numbers = #tpu.dot_dimension_numbers<[1], [0], [0], [1], [0, 0, 1, 1], [], []>} : vector<32x16xf32>, vector<16x16xf32>, vector<32x16xf32> -> vector<32x16xf32>
    %93 = arith.addf %90, %92 : vector<32x16xf32>
    %94 = vector.extract_strided_slice %0 {offsets = [71, 0], sizes = [1, 16], strides = [1, 1]} : vector<88x128xf32> to vector<1x16xf32>
    %95 = vector.broadcast %86 : vector<32x1xf32> to vector<32x16xf32>
    %96 = vector.broadcast %94 : vector<1x16xf32> to vector<32x16xf32>
    %97 = arith.mulf %95, %96 : vector<32x16xf32>
    %98 = arith.addf %93, %97 : vector<32x16xf32>
    %99 = vector.extract_strided_slice %0 {offsets = [72, 0], sizes = [1, 16], strides = [1, 1]} : vector<88x128xf32> to vector<1x16xf32>
    %100 = vector.broadcast %99 : vector<1x16xf32> to vector<32x16xf32>
    %101 = arith.addf %98, %100 : vector<32x16xf32>
    %cst_32 = arith.constant 0.000000e+00 : f32
    %102 = vector.broadcast %cst_32 : f32 to vector<32x16xf32>
    %103 = arith.subf %102, %101 : vector<32x16xf32>
    %104 = math.exp %103 : vector<32x16xf32>
    %cst_33 = arith.constant 1.000000e+00 : f32
    %105 = vector.broadcast %cst_33 : f32 to vector<32x16xf32>
    %106 = arith.addf %105, %104 : vector<32x16xf32>
    %cst_34 = arith.constant 1.000000e+00 : f32
    %107 = vector.broadcast %cst_34 : f32 to vector<32x16xf32>
    %108 = arith.divf %107, %106 : vector<32x16xf32>
    %109 = arith.mulf %101, %108 : vector<32x16xf32>
    %110 = vector.extract_strided_slice %0 {offsets = [0, 64], sizes = [16, 16], strides = [1, 1]} : vector<88x128xf32> to vector<16x16xf32>
    %cst_35 = arith.constant dense<0.000000e+00> : vector<32x16xf32>
    %111 = tpu.matmul %109, %110, %cst_35 {dimension_numbers = #tpu.dot_dimension_numbers<[1], [0], [0], [1], [0, 0, 1, 1], [], []>} : vector<32x16xf32>, vector<16x16xf32>, vector<32x16xf32> -> vector<32x16xf32>
    %112 = vector.extract_strided_slice %0 {offsets = [73, 0], sizes = [1, 16], strides = [1, 1]} : vector<88x128xf32> to vector<1x16xf32>
    %113 = vector.broadcast %112 : vector<1x16xf32> to vector<32x16xf32>
    %114 = arith.addf %111, %113 : vector<32x16xf32>
    %cst_36 = arith.constant 0.000000e+00 : f32
    %115 = vector.broadcast %cst_36 : f32 to vector<32x16xf32>
    %116 = arith.subf %115, %114 : vector<32x16xf32>
    %117 = math.exp %116 : vector<32x16xf32>
    %cst_37 = arith.constant 1.000000e+00 : f32
    %118 = vector.broadcast %cst_37 : f32 to vector<32x16xf32>
    %119 = arith.addf %118, %117 : vector<32x16xf32>
    %cst_38 = arith.constant 1.000000e+00 : f32
    %120 = vector.broadcast %cst_38 : f32 to vector<32x16xf32>
    %121 = arith.divf %120, %119 : vector<32x16xf32>
    %122 = arith.mulf %114, %121 : vector<32x16xf32>
    %cst_39 = arith.constant dense<0.000000e+00> : vector<16x16xf32>
    %123 = tpu.matmul %5, %122, %cst_39 {dimension_numbers = #tpu.dot_dimension_numbers<[1], [0], [0], [1], [0, 0, 1, 1], [], []>} : vector<16x32xf32>, vector<32x16xf32>, vector<16x16xf32> -> vector<16x16xf32>
    %124 = tpu.concatenate %82, %123 in 1 : vector<16x16xf32>, vector<16x16xf32> -> vector<16x32xf32>
    %125 = vector.extract_strided_slice %0 {offsets = [32, 0], sizes = [32, 16], strides = [1, 1]} : vector<88x128xf32> to vector<32x16xf32>
    %cst_40 = arith.constant dense<0.000000e+00> : vector<16x16xf32>
    %126 = tpu.matmul %124, %125, %cst_40 {dimension_numbers = #tpu.dot_dimension_numbers<[1], [0], [0], [1], [0, 0, 1, 1], [], []>} : vector<16x32xf32>, vector<32x16xf32>, vector<16x16xf32> -> vector<16x16xf32>
    %127 = vector.extract_strided_slice %0 {offsets = [74, 0], sizes = [1, 16], strides = [1, 1]} : vector<88x128xf32> to vector<1x16xf32>
    %128 = vector.broadcast %127 : vector<1x16xf32> to vector<16x16xf32>
    %129 = arith.addf %126, %128 : vector<16x16xf32>
    %cst_41 = arith.constant 0.000000e+00 : f32
    %130 = vector.broadcast %cst_41 : f32 to vector<16x16xf32>
    %131 = arith.subf %130, %129 : vector<16x16xf32>
    %132 = math.exp %131 : vector<16x16xf32>
    %cst_42 = arith.constant 1.000000e+00 : f32
    %133 = vector.broadcast %cst_42 : f32 to vector<16x16xf32>
    %134 = arith.addf %133, %132 : vector<16x16xf32>
    %cst_43 = arith.constant 1.000000e+00 : f32
    %135 = vector.broadcast %cst_43 : f32 to vector<16x16xf32>
    %136 = arith.divf %135, %134 : vector<16x16xf32>
    %137 = arith.mulf %129, %136 : vector<16x16xf32>
    %138 = vector.extract_strided_slice %0 {offsets = [0, 80], sizes = [16, 16], strides = [1, 1]} : vector<88x128xf32> to vector<16x16xf32>
    %cst_44 = arith.constant dense<0.000000e+00> : vector<16x16xf32>
    %139 = tpu.matmul %137, %138, %cst_44 {dimension_numbers = #tpu.dot_dimension_numbers<[1], [0], [0], [1], [0, 0, 1, 1], [], []>} : vector<16x16xf32>, vector<16x16xf32>, vector<16x16xf32> -> vector<16x16xf32>
    %140 = arith.addf %82, %139 : vector<16x16xf32>
    %141 = vector.extract_strided_slice %0 {offsets = [75, 0], sizes = [1, 16], strides = [1, 1]} : vector<88x128xf32> to vector<1x16xf32>
    %142 = vector.broadcast %141 : vector<1x16xf32> to vector<16x16xf32>
    %143 = arith.addf %140, %142 : vector<16x16xf32>
    %cst_45 = arith.constant dense<0.000000e+00> : vector<16x16xf32>
    %144 = tpu.matmul %7, %143, %cst_45 {dimension_numbers = #tpu.dot_dimension_numbers<[1], [0], [0], [1], [0, 0, 1, 1], [], []>} : vector<16x16xf32>, vector<16x16xf32>, vector<16x16xf32> -> vector<16x16xf32>
    %145 = vector.extract_strided_slice %0 {offsets = [16, 0], sizes = [16, 16], strides = [1, 1]} : vector<88x128xf32> to vector<16x16xf32>
    %cst_46 = arith.constant dense<0.000000e+00> : vector<16x16xf32>
    %146 = tpu.matmul %144, %145, %cst_46 {dimension_numbers = #tpu.dot_dimension_numbers<[1], [0], [0], [1], [0, 0, 1, 1], [], []>} : vector<16x16xf32>, vector<16x16xf32>, vector<16x16xf32> -> vector<16x16xf32>
    %147 = vector.extract_strided_slice %0 {offsets = [76, 0], sizes = [1, 16], strides = [1, 1]} : vector<88x128xf32> to vector<1x16xf32>
    %148 = vector.broadcast %147 : vector<1x16xf32> to vector<16x16xf32>
    %149 = arith.addf %146, %148 : vector<16x16xf32>
    %cst_47 = arith.constant 0.000000e+00 : f32
    %150 = vector.broadcast %cst_47 : f32 to vector<16x16xf32>
    %151 = arith.maximumf %149, %150 : vector<16x16xf32>
    %152 = vector.extract_strided_slice %0 {offsets = [16, 16], sizes = [16, 16], strides = [1, 1]} : vector<88x128xf32> to vector<16x16xf32>
    %cst_48 = arith.constant dense<0.000000e+00> : vector<16x16xf32>
    %153 = tpu.matmul %151, %152, %cst_48 {dimension_numbers = #tpu.dot_dimension_numbers<[1], [0], [0], [1], [0, 0, 1, 1], [], []>} : vector<16x16xf32>, vector<16x16xf32>, vector<16x16xf32> -> vector<16x16xf32>
    %154 = vector.extract_strided_slice %0 {offsets = [77, 0], sizes = [1, 16], strides = [1, 1]} : vector<88x128xf32> to vector<1x16xf32>
    %155 = vector.broadcast %154 : vector<1x16xf32> to vector<16x16xf32>
    %156 = arith.addf %153, %155 : vector<16x16xf32>
    %cst_49 = arith.constant 0.000000e+00 : f32
    %157 = vector.broadcast %cst_49 : f32 to vector<16x16xf32>
    %158 = arith.cmpf ogt, %156, %157 : vector<16x16xf32>
    %cst_50 = arith.constant 0.000000e+00 : f32
    %159 = vector.broadcast %cst_50 : f32 to vector<16x16xf32>
    %160 = arith.minimumf %156, %159 : vector<16x16xf32>
    %161 = math.exp %160 : vector<16x16xf32>
    %cst_51 = arith.constant 1.000000e+00 : f32
    %162 = vector.broadcast %cst_51 : f32 to vector<16x16xf32>
    %163 = arith.subf %161, %162 : vector<16x16xf32>
    %cst_52 = arith.constant 1.000000e-01 : f32
    %164 = vector.broadcast %cst_52 : f32 to vector<16x16xf32>
    %165 = arith.mulf %164, %163 : vector<16x16xf32>
    %166 = arith.select %158, %156, %165 : vector<16x16xi1>, vector<16x16xf32>
    %cst_53 = arith.constant dense<0.000000e+00> : vector<16x16xf32>
    %167 = tpu.matmul %7, %166, %cst_53 {dimension_numbers = #tpu.dot_dimension_numbers<[1], [0], [0], [1], [0, 0, 1, 1], [], []>} : vector<16x16xf32>, vector<16x16xf32>, vector<16x16xf32> -> vector<16x16xf32>
    %168 = vector.extract_strided_slice %0 {offsets = [16, 32], sizes = [16, 16], strides = [1, 1]} : vector<88x128xf32> to vector<16x16xf32>
    %cst_54 = arith.constant dense<0.000000e+00> : vector<16x16xf32>
    %169 = tpu.matmul %167, %168, %cst_54 {dimension_numbers = #tpu.dot_dimension_numbers<[1], [0], [0], [1], [0, 0, 1, 1], [], []>} : vector<16x16xf32>, vector<16x16xf32>, vector<16x16xf32> -> vector<16x16xf32>
    %170 = vector.extract_strided_slice %0 {offsets = [78, 0], sizes = [1, 16], strides = [1, 1]} : vector<88x128xf32> to vector<1x16xf32>
    %171 = vector.broadcast %170 : vector<1x16xf32> to vector<16x16xf32>
    %172 = arith.addf %169, %171 : vector<16x16xf32>
    %cst_55 = arith.constant 0.000000e+00 : f32
    %173 = vector.broadcast %cst_55 : f32 to vector<16x16xf32>
    %174 = arith.maximumf %172, %173 : vector<16x16xf32>
    %175 = vector.extract_strided_slice %0 {offsets = [16, 48], sizes = [16, 16], strides = [1, 1]} : vector<88x128xf32> to vector<16x16xf32>
    %cst_56 = arith.constant dense<0.000000e+00> : vector<16x16xf32>
    %176 = tpu.matmul %174, %175, %cst_56 {dimension_numbers = #tpu.dot_dimension_numbers<[1], [0], [0], [1], [0, 0, 1, 1], [], []>} : vector<16x16xf32>, vector<16x16xf32>, vector<16x16xf32> -> vector<16x16xf32>
    %177 = vector.extract_strided_slice %0 {offsets = [79, 0], sizes = [1, 16], strides = [1, 1]} : vector<88x128xf32> to vector<1x16xf32>
    %178 = vector.broadcast %177 : vector<1x16xf32> to vector<16x16xf32>
    %179 = arith.addf %176, %178 : vector<16x16xf32>
    %cst_57 = arith.constant 0.000000e+00 : f32
    %180 = vector.broadcast %cst_57 : f32 to vector<16x16xf32>
    %181 = arith.cmpf ogt, %179, %180 : vector<16x16xf32>
    %cst_58 = arith.constant 0.000000e+00 : f32
    %182 = vector.broadcast %cst_58 : f32 to vector<16x16xf32>
    %183 = arith.minimumf %179, %182 : vector<16x16xf32>
    %184 = math.exp %183 : vector<16x16xf32>
    %cst_59 = arith.constant 1.000000e+00 : f32
    %185 = vector.broadcast %cst_59 : f32 to vector<16x16xf32>
    %186 = arith.subf %184, %185 : vector<16x16xf32>
    %cst_60 = arith.constant 1.000000e-01 : f32
    %187 = vector.broadcast %cst_60 : f32 to vector<16x16xf32>
    %188 = arith.mulf %187, %186 : vector<16x16xf32>
    %189 = arith.select %181, %179, %188 : vector<16x16xi1>, vector<16x16xf32>
    %190 = vector.extract_strided_slice %189 {offsets = [0, 0], sizes = [8, 16], strides = [1, 1]} : vector<16x16xf32> to vector<8x16xf32>
    %cst_61 = arith.constant dense<0.000000e+00> : vector<16xf32>
    %191 = vector.multi_reduction <add>, %190, %cst_61 [0] : vector<8x16xf32> to vector<16xf32>
    %192 = vector.shape_cast %191 : vector<16xf32> to vector<1x16xf32>
    %cst_62 = arith.constant 1.250000e-01 : f32
    %193 = vector.broadcast %cst_62 : f32 to vector<1x16xf32>
    %194 = arith.mulf %192, %193 : vector<1x16xf32>
    %cst_63 = arith.constant dense<0xFF800000> : vector<16xf32>
    %195 = vector.multi_reduction <maximumf>, %190, %cst_63 [0] : vector<8x16xf32> to vector<16xf32>
    %196 = vector.shape_cast %195 : vector<16xf32> to vector<1x16xf32>
    %197 = vector.extract_strided_slice %189 {offsets = [8, 0], sizes = [8, 16], strides = [1, 1]} : vector<16x16xf32> to vector<8x16xf32>
    %cst_64 = arith.constant dense<0.000000e+00> : vector<16xf32>
    %198 = vector.multi_reduction <add>, %197, %cst_64 [0] : vector<8x16xf32> to vector<16xf32>
    %199 = vector.shape_cast %198 : vector<16xf32> to vector<1x16xf32>
    %cst_65 = arith.constant 1.250000e-01 : f32
    %200 = vector.broadcast %cst_65 : f32 to vector<1x16xf32>
    %201 = arith.mulf %199, %200 : vector<1x16xf32>
    %cst_66 = arith.constant dense<0xFF800000> : vector<16xf32>
    %202 = vector.multi_reduction <maximumf>, %197, %cst_66 [0] : vector<8x16xf32> to vector<16xf32>
    %203 = vector.shape_cast %202 : vector<16xf32> to vector<1x16xf32>
    %204 = tpu.concatenate %194, %201 in 0 : vector<1x16xf32>, vector<1x16xf32> -> vector<2x16xf32>
    %205 = tpu.concatenate %196, %203 in 0 : vector<1x16xf32>, vector<1x16xf32> -> vector<2x16xf32>
    %206 = tpu.concatenate %204, %205 in 1 : vector<2x16xf32>, vector<2x16xf32> -> vector<2x32xf32>
    %207 = vector.extract_strided_slice %0 {offsets = [32, 16], sizes = [32, 16], strides = [1, 1]} : vector<88x128xf32> to vector<32x16xf32>
    %cst_67 = arith.constant dense<0.000000e+00> : vector<2x16xf32>
    %208 = tpu.matmul %206, %207, %cst_67 {dimension_numbers = #tpu.dot_dimension_numbers<[1], [0], [0], [1], [0, 0, 1, 1], [], []>} : vector<2x32xf32>, vector<32x16xf32>, vector<2x16xf32> -> vector<2x16xf32>
    %209 = vector.extract_strided_slice %0 {offsets = [80, 0], sizes = [1, 16], strides = [1, 1]} : vector<88x128xf32> to vector<1x16xf32>
    %210 = vector.broadcast %9 : vector<2x1xf32> to vector<2x16xf32>
    %211 = vector.broadcast %209 : vector<1x16xf32> to vector<2x16xf32>
    %212 = arith.mulf %210, %211 : vector<2x16xf32>
    %213 = arith.addf %208, %212 : vector<2x16xf32>
    %214 = vector.extract_strided_slice %0 {offsets = [81, 0], sizes = [1, 16], strides = [1, 1]} : vector<88x128xf32> to vector<1x16xf32>
    %215 = vector.broadcast %214 : vector<1x16xf32> to vector<2x16xf32>
    %216 = arith.addf %213, %215 : vector<2x16xf32>
    %cst_68 = arith.constant 0.000000e+00 : f32
    %217 = vector.broadcast %cst_68 : f32 to vector<2x16xf32>
    %218 = arith.cmpf ogt, %216, %217 : vector<2x16xf32>
    %cst_69 = arith.constant 0.000000e+00 : f32
    %219 = vector.broadcast %cst_69 : f32 to vector<2x16xf32>
    %220 = arith.minimumf %216, %219 : vector<2x16xf32>
    %221 = math.exp %220 : vector<2x16xf32>
    %cst_70 = arith.constant 1.000000e+00 : f32
    %222 = vector.broadcast %cst_70 : f32 to vector<2x16xf32>
    %223 = arith.subf %221, %222 : vector<2x16xf32>
    %cst_71 = arith.constant 1.000000e-01 : f32
    %224 = vector.broadcast %cst_71 : f32 to vector<2x16xf32>
    %225 = arith.mulf %224, %223 : vector<2x16xf32>
    %226 = arith.select %218, %216, %225 : vector<2x16xi1>, vector<2x16xf32>
    %227 = vector.extract_strided_slice %0 {offsets = [16, 64], sizes = [16, 16], strides = [1, 1]} : vector<88x128xf32> to vector<16x16xf32>
    %cst_72 = arith.constant dense<0.000000e+00> : vector<2x16xf32>
    %228 = tpu.matmul %226, %227, %cst_72 {dimension_numbers = #tpu.dot_dimension_numbers<[1], [0], [0], [1], [0, 0, 1, 1], [], []>} : vector<2x16xf32>, vector<16x16xf32>, vector<2x16xf32> -> vector<2x16xf32>
    %229 = vector.extract_strided_slice %0 {offsets = [82, 0], sizes = [1, 16], strides = [1, 1]} : vector<88x128xf32> to vector<1x16xf32>
    %230 = vector.broadcast %229 : vector<1x16xf32> to vector<2x16xf32>
    %231 = arith.addf %228, %230 : vector<2x16xf32>
    %232 = vector.extract_strided_slice %231 {offsets = [0, 0], sizes = [2, 2], strides = [1, 1]} : vector<2x16xf32> to vector<2x2xf32>
    %cst_73 = arith.constant dense<0xFF800000> : vector<2xf32>
    %233 = vector.multi_reduction <maximumf>, %232, %cst_73 [1] : vector<2x2xf32> to vector<2xf32>
    %234 = vector.shape_cast %233 : vector<2xf32> to vector<2x1xf32>
    %235 = vector.broadcast %234 : vector<2x1xf32> to vector<2x2xf32>
    %236 = arith.subf %232, %235 : vector<2x2xf32>
    %237 = math.exp %236 : vector<2x2xf32>
    %cst_74 = arith.constant dense<0.000000e+00> : vector<2xf32>
    %238 = vector.multi_reduction <add>, %237, %cst_74 [1] : vector<2x2xf32> to vector<2xf32>
    %239 = vector.shape_cast %238 : vector<2xf32> to vector<2x1xf32>
    %240 = vector.broadcast %239 : vector<2x1xf32> to vector<2x2xf32>
    %241 = arith.divf %237, %240 : vector<2x2xf32>
    %c0_75 = arith.constant 0 : index
    %c0_76 = arith.constant 0 : index
    %242 = vector.load %arg4[%c0_75, %c0_76] : memref<2x2xf32, #tpu.memory_space<vmem>>, vector<2x2xf32>
    tpu.vector_store %arg4[%c0_75, %c0_76], %241 {strides = array<i32>} : memref<2x2xf32, #tpu.memory_space<vmem>>, vector<2x2xf32>,
    return
  }
}

</mosaic_0001>

<llo_original>
// kernel: equiv_nophys_forward.1
$region0: #{equiv_nophys_forward.1}
  #allocation0 [shape = 'u32[]', space=smem, size = 0x4, offset = 0x4, fixed_abs, tag = 'smem constant byte address 0x4 - core index']
  #allocation1 [shape = 'u32[144,128]{1,0:T(1,128)}', space=vmem, size = 0x12000, scoped, tag = 'internal scratch']
  %s0 = inlined_call_operand.vmem [shape: f32[16,3], index: 0, kind: input, shape index: {}]
  %s1 = inlined_call_operand.vmem [shape: f32[2,1], index: 1, kind: input, shape index: {}]
  %s2 = inlined_call_operand.hbm [shape: f32[48,128], index: 2, kind: input, shape index: {}]
  %s3 = inlined_call_operand.hbm [shape: f32[88,128], index: 3, kind: input, shape index: {}]
  %s4 = inlined_call_operand.hbm [shape: f32[2,2], index: 4, kind: output, shape index: {}]
  %s5 = sld [smem:[#allocation0]]
  $region34: #{equiv_nophys_forward.1} parent=0
    _
  %s7 = ssub.s32 1, %s5
  %s8 = scalar_select 0, %s7, %s5
  $region1: #{equiv_nophys_forward.1} parent=0
    #allocation2 [shape = 'u8[24576]{0}', space=vmem, size = 0x6000, scoped, tag = 'input window, operand 2, single buffered']
    #allocation3 [shape = 's32[1]{0}', space=sflag, size = 0x4, scoped, tag = 'scoped memory for equiv_nophys_forward.1']
    #allocation4 [shape = 's32[1]{0}', space=sflag, size = 0x4, scoped, tag = 'scoped memory for equiv_nophys_forward.1']
    #allocation5 [shape = 'u8[45056]{0}', space=vmem, size = 0xb000, scoped, tag = 'input window, operand 3, single buffered']
    #allocation6 [shape = 's32[1]{0}', space=sflag, size = 0x4, scoped, tag = 'scoped memory for equiv_nophys_forward.1']
    #allocation7 [shape = 'u8[1024]{0}', space=vmem, size = 0x400, scoped, tag = 'output window, operand 0, single buffered']
    %9 = vsyncpa [#allocation3], 0
    %10 = vsyncpa [#allocation6], 0
    %11 = vsyncpa [#allocation4], 0
    // Predicated region
    $region2: #{equiv_nophys_forward.1} parent=1 // pred_check
      _
    $region3: #{equiv_nophys_forward.1} parent=1 // pred_check_branch
      %13 = sbr.rel (0) target = $region5
    $region4: #{equiv_nophys_forward.1} parent=1 // pred_region
      _
    $region5: #{equiv_nophys_forward.1} parent=1 // pred_fallthru
      _
    // Predicated region
    $region6: #{equiv_nophys_forward.1} parent=1 // pred_check
      _
    $region7: #{equiv_nophys_forward.1} parent=1 // pred_check_branch
      %15 = sbr.rel (0) target = $region9
    $region8: #{equiv_nophys_forward.1} parent=1 // pred_region
      _
    $region9: #{equiv_nophys_forward.1} parent=1 // pred_fallthru
      _
    // Predicated region
    $region10: #{equiv_nophys_forward.1} parent=1 // pred_check
      _
    $region11: #{equiv_nophys_forward.1} parent=1 // pred_check_branch
      %17 = sbr.rel (0) target = $region13
    $region12: #{equiv_nophys_forward.1} parent=1 // pred_region
      %s19 = ssub.s32 768, 768
      %20 = vsyncadd [#allocation3], %s19
      %s21 = sshll.u32 [#allocation2], 4
      %s22 = int_to_ptr.vmem [resolvable:$true] %s21
      %27 = dma.hbm_to_vmem [thread:$0]  %s2, 768, %s22, [#allocation3], 128, 128, 8
    $region13: #{equiv_nophys_forward.1} parent=1 // pred_fallthru
      _
    // Predicated region
    $region14: #{equiv_nophys_forward.1} parent=1 // pred_check
      _
    $region15: #{equiv_nophys_forward.1} parent=1 // pred_check_branch
      %29 = sbr.rel (0) target = $region17
    $region16: #{equiv_nophys_forward.1} parent=1 // pred_region
      %s31 = ssub.s32 1408, 1408
      %32 = vsyncadd [#allocation6], %s31
      %s33 = sshll.u32 [#allocation5], 4
      %s34 = int_to_ptr.vmem [resolvable:$true] %s33
      %39 = dma.hbm_to_vmem [thread:$0]  %s3, 1408, %s34, [#allocation6], 128, 128, 8
    $region17: #{equiv_nophys_forward.1} parent=1 // pred_fallthru
      _
    // Predicated region
    $region18: #{equiv_nophys_forward.1} parent=1 // pred_check
      _
    $region19: #{equiv_nophys_forward.1} parent=1 // pred_check_branch
      %41 = sbr.rel (0) target = $region21
    $region20: #{equiv_nophys_forward.1} parent=1 // pred_region
      %42 = dma.done [#allocation3], 768
    $region21: #{equiv_nophys_forward.1} parent=1 // pred_fallthru
      _
    // Predicated region
    $region22: #{equiv_nophys_forward.1} parent=1 // pred_check
      _
    $region23: #{equiv_nophys_forward.1} parent=1 // pred_check_branch
      %44 = sbr.rel (0) target = $region25
    $region24: #{equiv_nophys_forward.1} parent=1 // pred_region
      %45 = dma.done [#allocation6], 1408
    $region25: #{equiv_nophys_forward.1} parent=1 // pred_fallthru
      _
    %v46 = vld [vmem:[#allocation5] sm:$0xff]
    %v47 = vld [vmem:[#allocation5 + $0x8] sm:$0xff]
    %v48 = vld [vmem:[#allocation5 + $0x10] sm:$0xff]
    %v49 = vld [vmem:[#allocation5 + $0x18] sm:$0xff]
    %v50 = vld [vmem:[#allocation5 + $0x20] sm:$0xff]
    %v51 = vld [vmem:[#allocation5 + $0x28] sm:$0xff]
    %v52 = vld [vmem:[#allocation5 + $0x30] sm:$0xff]
    %v53 = vld [vmem:[#allocation5 + $0x38] sm:$0xff]
    %v54 = vld [vmem:[#allocation5 + $0x40] sm:$0xff]
    %v55 = vld [vmem:[#allocation5 + $0x48] sm:$0xff]
    %v56 = vld [vmem:[#allocation5 + $0x50] sm:$0xff]
    %v57 = vld [vmem:[#allocation2] sm:$0xff]
    %v58 = vld [vmem:[#allocation2 + $0x8] sm:$0xff]
    %v59 = vld [vmem:[#allocation2 + $0x10] sm:$0xff]
    %v60 = vld [vmem:[#allocation2 + $0x18] sm:$0xff]
    %v61 = vld [vmem:[#allocation2 + $0x20] sm:$0xff]
    %v62 = vld [vmem:[#allocation2 + $0x28] sm:$0xff]
    %v63 = vld [vmem:[%s0] sm:$0xff]
    %v64 = vld [vmem:[%s0 + $0x8] sm:$0xff]
    %v65 = vld [vmem:[%s1] sm:$0x3]
    %70 = vrot.lane.b32.xlu0 %v57, 96
    %v71 = vpop.permute.xlu0 %70
    %72 = vrot.lane.b32.xlu0 %v58, 96
    %v73 = vpop.permute.xlu0 %72
    %74 = vrot.lane.b32.xlu0 %v59, 96
    %v75 = vpop.permute.xlu0 %74
    %76 = vrot.lane.b32.xlu0 %v60, 96
    %v77 = vpop.permute.xlu0 %76
    %vm78 = vcmask 130048
    %v79 = vsel %vm78, %v71, 0
    %v81 = vsel %vm78, %v73, 0
    %v83 = vsel %vm78, %v75, 0
    %v85 = vsel %vm78, %v77, 0
    %87 = vmatprep.subr.mxu0 0.0
    %88 = vmatpush1.msra.mxu0 %v63
    %89 = vmatprep.subr.mxu0 0.0
    %90 = vmatpush1.msra.mxu0 %v64
    %91 = vmatprep.subr.mxu0 0.0
    %92 = vmatpush1.msra.mxu0 0.0
    %93 = vmatprep.subr.mxu0 0.0
    %94 = vmatpush1.msra.mxu0 0.0
    %95 = vmatprep.subr.mxu0 0.0
    %96 = vmatpush1.msra.mxu0 0.0
    %97 = vmatprep.subr.mxu0 0.0
    %98 = vmatpush1.msra.mxu0 0.0
    %99 = vmatprep.subr.mxu0 0.0
    %100 = vmatpush1.msra.mxu0 0.0
    %101 = vmatprep.subr.mxu0 0.0
    %102 = vmatpush1.msra.mxu0 0.0
    %103 = vmatprep.subr.mxu0 0.0
    %104 = vmatpush1.msra.mxu0 0.0
    %105 = vmatprep.subr.mxu0 0.0
    %106 = vmatpush1.msra.mxu0 0.0
    %107 = vmatprep.subr.mxu0 0.0
    %108 = vmatpush1.msra.mxu0 0.0
    %109 = vmatprep.subr.mxu0 0.0
    %110 = vmatpush1.msra.mxu0 0.0
    %111 = vmatprep.subr.mxu0 0.0
    %112 = vmatpush1.msra.mxu0 0.0
    %113 = vmatprep.subr.mxu0 0.0
    %114 = vmatpush1.msra.mxu0 0.0
    %115 = vmatprep.subr.mxu0 0.0
    %116 = vmatpush1.msra.mxu0 0.0
    %117 = vmatprep.subr.mxu0 0.0
    %118 = vmatpush1.msra.mxu0 0.0
    %119 = vmatprep.subr.mxu0 0.0
    %120 = vmatpush1.msra.mxu0 0.0
    %121 = vmatprep.subr.mxu0 0.0
    %122 = vmatpush1.msra.mxu0 0.0
    %123 = vmatprep.subr.mxu0 0.0
    %124 = vmatpush1.msra.mxu0 0.0
    %125 = vmatprep.subr.mxu0 0.0
    %126 = vmatpush1.msra.mxu0 0.0
    %127 = vmatprep.subr.mxu0 0.0
    %128 = vmatpush1.msra.mxu0 0.0
    %129 = vmatprep.subr.mxu0 0.0
    %130 = vmatpush1.msra.mxu0 0.0
    %131 = vmatprep.subr.mxu0 0.0
    %132 = vmatpush1.msra.mxu0 0.0
    %133 = vmatprep.subr.mxu0 0.0
    %134 = vmatpush1.msra.mxu0 0.0
    %135 = vmatprep.subr.mxu0 0.0
    %136 = vmatpush1.msra.mxu0 0.0
    %137 = vmatprep.subr.mxu0 0.0
    %138 = vmatpush1.msra.mxu0 0.0
    %139 = vmatprep.subr.mxu0 0.0
    %140 = vmatpush1.msra.mxu0 0.0
    %141 = vmatprep.subr.mxu0 0.0
    %142 = vmatpush1.msra.mxu0 0.0
    %143 = vmatprep.subr.mxu0 0.0
    %144 = vmatpush1.msra.mxu0 0.0
    %145 = vmatprep.subr.mxu0 0.0
    %146 = vmatpush1.msra.mxu0 0.0
    %147 = vmatprep.subr.mxu0 0.0
    %148 = vmatpush1.msra.mxu0 0.0
    %149 = vmatprep.subr.mxu0 0.0
    %150 = vmatpush1.msra.mxu0 0.0
    %151 = vmatprep.mubr.f32.mxu0 0.0
    %152 = vmatmul.mubr.f32.gmra.mrb[0].mxu0 %v79
    %v153 = vpop.f32.mrb[0].mxu0
    %v154 = vadd.f32 0.0, %v153
    %v155 = vpop.f32.mrb[0].mxu0
    %156 = vmatprep.mubr.f32.mxu0 0.0
    %157 = vmatmul.mubr.f32.gmra.mrb[0].mxu0 %v81
    %v158 = vpop.f32.mrb[0].mxu0
    %v159 = vadd.f32 0.0, %v158
    %v160 = vpop.f32.mrb[0].mxu0
    %161 = vmatprep.mubr.f32.mxu0 0.0
    %162 = vmatmul.mubr.f32.gmra.mrb[0].mxu0 %v83
    %v163 = vpop.f32.mrb[0].mxu0
    %v164 = vadd.f32 0.0, %v163
    %v165 = vpop.f32.mrb[0].mxu0
    %166 = vmatprep.mubr.f32.mxu0 0.0
    %167 = vmatmul.mubr.f32.gmra.mrb[0].mxu0 %v85
    %v168 = vpop.f32.mrb[0].mxu0
    %v169 = vadd.f32 0.0, %v168
    %v170 = vpop.f32.mrb[0].mxu0
    %171 = vdwg.mxu0
    %v172 = vmul.f32 %v154, %v154
    %v173 = vmul.f32 %v159, %v159
    %v174 = vmul.f32 %v164, %v164
    %v175 = vmul.f32 %v169, %v169
    %vm176 = vcmask 23552
    %v177 = vsel %vm176, %v172, 0.0
    %178 = vadd.xlane.f32.xlu0 %v177
    %v179 = vpop.xlane.xlu0 %178
    %v180 = vsel %vm176, %v173, 0.0
    %181 = vadd.xlane.f32.xlu0 %v180
    %v182 = vpop.xlane.xlu0 %181
    %v183 = vsel %vm176, %v174, 0.0
    %184 = vadd.xlane.f32.xlu0 %v183
    %v185 = vpop.xlane.xlu0 %184
    %v186 = vsel %vm176, %v175, 0.0
    %187 = vadd.xlane.f32.xlu0 %v186
    %v188 = vpop.xlane.xlu0 %187
    %v189 = vlaneseq
    %v190 = vshrl.u32 %v189, 7
    %v191 = vsub.s32 0, %v190
    %v192 = vrot.slane %v54, %v191
    %v193 = vmul.f32 %v179, %v192
    %v194 = vmul.f32 %v182, %v192
    %v195 = vmul.f32 %v185, %v192
    %v196 = vmul.f32 %v188, %v192
    %v197 = vlaneseq
    %v198 = vshrl.u32 %v197, 7
    %v199 = vsub.s32 1, %v198
    %v200 = vrot.slane %v54, %v199
    %v201 = vadd.f32 %v193, %v200
    %v202 = vadd.f32 %v194, %v200
    %v203 = vadd.f32 %v195, %v200
    %v204 = vadd.f32 %v196, %v200
    %v205 = vsub.f32 0.0, %v201
    %v206 = vsub.f32 0.0, %v202
    %v207 = vsub.f32 0.0, %v203
    %v208 = vsub.f32 0.0, %v204
    %v209 = vmul.f32 %v205, 1.442695
    %v210 = vpow.pop %v209
    %v211 = vmul.f32 %v206, 1.442695
    %v212 = vpow.pop %v211
    %v213 = vmul.f32 %v207, 1.442695
    %v214 = vpow.pop %v213
    %v215 = vmul.f32 %v208, 1.442695
    %v216 = vpow.pop %v215
    %v217 = vadd.f32 %v210, 1.0
    %v218 = vadd.f32 %v212, 1.0
    %v219 = vadd.f32 %v214, 1.0
    %v220 = vadd.f32 %v216, 1.0
    %v221 = vrcp.pop %v217
    %v222 = vmul.f32 1.0, %v221
    %v223 = vrcp.pop %v218
    %v224 = vmul.f32 1.0, %v223
    %v225 = vrcp.pop %v219
    %v226 = vmul.f32 1.0, %v225
    %v227 = vrcp.pop %v220
    %v228 = vmul.f32 1.0, %v227
    %v229 = vmul.f32 %v201, %v222
    %v230 = vmul.f32 %v202, %v224
    %v231 = vmul.f32 %v203, %v226
    %v232 = vmul.f32 %v204, %v228
    %v233 = vlaneseq
    %v234 = vshrl.u32 %v233, 7
    %v235 = vsub.s32 2, %v234
    %v236 = vrot.slane %v54, %v235
    %v238 = vsel %vm78, %v229, 0
    %v241 = vsel %vm78, %v230, 0
    %v244 = vsel %vm78, %v231, 0
    %v247 = vsel %vm78, %v232, 0
    %249 = vmatprep.subr.mxu0 0.0
    %250 = vmatpush1.msra.mxu0 %v46
    %251 = vmatprep.subr.mxu0 0.0
    %252 = vmatpush1.msra.mxu0 %v47
    %253 = vmatprep.subr.mxu0 0.0
    %254 = vmatpush1.msra.mxu0 0.0
    %255 = vmatprep.subr.mxu0 0.0
    %256 = vmatpush1.msra.mxu0 0.0
    %257 = vmatprep.subr.mxu0 0.0
    %258 = vmatpush1.msra.mxu0 0.0
    %259 = vmatprep.subr.mxu0 0.0
    %260 = vmatpush1.msra.mxu0 0.0
    %261 = vmatprep.subr.mxu0 0.0
    %262 = vmatpush1.msra.mxu0 0.0
    %263 = vmatprep.subr.mxu0 0.0
    %264 = vmatpush1.msra.mxu0 0.0
    %265 = vmatprep.subr.mxu0 0.0
    %266 = vmatpush1.msra.mxu0 0.0
    %267 = vmatprep.subr.mxu0 0.0
    %268 = vmatpush1.msra.mxu0 0.0
    %269 = vmatprep.subr.mxu0 0.0
    %270 = vmatpush1.msra.mxu0 0.0
    %271 = vmatprep.subr.mxu0 0.0
    %272 = vmatpush1.msra.mxu0 0.0
    %273 = vmatprep.subr.mxu0 0.0
    %274 = vmatpush1.msra.mxu0 0.0
    %275 = vmatprep.subr.mxu0 0.0
    %276 = vmatpush1.msra.mxu0 0.0
    %277 = vmatprep.subr.mxu0 0.0
    %278 = vmatpush1.msra.mxu0 0.0
    %279 = vmatprep.subr.mxu0 0.0
    %280 = vmatpush1.msra.mxu0 0.0
    %281 = vmatprep.subr.mxu0 0.0
    %282 = vmatpush1.msra.mxu0 0.0
    %283 = vmatprep.subr.mxu0 0.0
    %284 = vmatpush1.msra.mxu0 0.0
    %285 = vmatprep.subr.mxu0 0.0
    %286 = vmatpush1.msra.mxu0 0.0
    %287 = vmatprep.subr.mxu0 0.0
    %288 = vmatpush1.msra.mxu0 0.0
    %289 = vmatprep.subr.mxu0 0.0
    %290 = vmatpush1.msra.mxu0 0.0
    %291 = vmatprep.subr.mxu0 0.0
    %292 = vmatpush1.msra.mxu0 0.0
    %293 = vmatprep.subr.mxu0 0.0
    %294 = vmatpush1.msra.mxu0 0.0
    %295 = vmatprep.subr.mxu0 0.0
    %296 = vmatpush1.msra.mxu0 0.0
    %297 = vmatprep.subr.mxu0 0.0
    %298 = vmatpush1.msra.mxu0 0.0
    %299 = vmatprep.subr.mxu0 0.0
    %300 = vmatpush1.msra.mxu0 0.0
    %301 = vmatprep.subr.mxu0 0.0
    %302 = vmatpush1.msra.mxu0 0.0
    %303 = vmatprep.subr.mxu0 0.0
    %304 = vmatpush1.msra.mxu0 0.0
    %305 = vmatprep.subr.mxu0 0.0
    %306 = vmatpush1.msra.mxu0 0.0
    %307 = vmatprep.subr.mxu0 0.0
    %308 = vmatpush1.msra.mxu0 0.0
    %309 = vmatprep.subr.mxu0 0.0
    %310 = vmatpush1.msra.mxu0 0.0
    %311 = vmatprep.subr.mxu0 0.0
    %312 = vmatpush1.msra.mxu0 0.0
    %313 = vmatprep.mubr.f32.mxu0 0.0
    %314 = vmatmul.mubr.f32.gmra.mrb[0].mxu0 %v238
    %v315 = vpop.f32.mrb[0].mxu0
    %v316 = vadd.f32 %v236, %v315
    %v317 = vpop.f32.mrb[0].mxu0
    %318 = vmatprep.mubr.f32.mxu0 0.0
    %319 = vmatmul.mubr.f32.gmra.mrb[0].mxu0 %v241
    %v320 = vpop.f32.mrb[0].mxu0
    %v321 = vadd.f32 %v236, %v320
    %v322 = vpop.f32.mrb[0].mxu0
    %323 = vmatprep.mubr.f32.mxu0 0.0
    %324 = vmatmul.mubr.f32.gmra.mrb[0].mxu0 %v244
    %v325 = vpop.f32.mrb[0].mxu0
    %v326 = vadd.f32 %v236, %v325
    %v327 = vpop.f32.mrb[0].mxu0
    %328 = vmatprep.mubr.f32.mxu0 0.0
    %329 = vmatmul.mubr.f32.gmra.mrb[0].mxu0 %v247
    %v330 = vpop.f32.mrb[0].mxu0
    %v331 = vadd.f32 %v236, %v330
    %v332 = vpop.f32.mrb[0].mxu0
    %333 = vdwg.mxu0
    %v334 = vsub.f32 0.0, %v316
    %v335 = vsub.f32 0.0, %v321
    %v336 = vsub.f32 0.0, %v326
    %v337 = vsub.f32 0.0, %v331
    %v338 = vmul.f32 %v334, 1.442695
    %v339 = vpow.pop %v338
    %v340 = vmul.f32 %v335, 1.442695
    %v341 = vpow.pop %v340
    %v342 = vmul.f32 %v336, 1.442695
    %v343 = vpow.pop %v342
    %v344 = vmul.f32 %v337, 1.442695
    %v345 = vpow.pop %v344
    %v346 = vadd.f32 %v339, 1.0
    %v347 = vadd.f32 %v341, 1.0
    %v348 = vadd.f32 %v343, 1.0
    %v349 = vadd.f32 %v345, 1.0
    %v350 = vrcp.pop %v346
    %v351 = vmul.f32 1.0, %v350
    %v352 = vrcp.pop %v347
    %v353 = vmul.f32 1.0, %v352
    %v354 = vrcp.pop %v348
    %v355 = vmul.f32 1.0, %v354
    %v356 = vrcp.pop %v349
    %v357 = vmul.f32 1.0, %v356
    %v358 = vmul.f32 %v316, %v351
    %v359 = vmul.f32 %v321, %v353
    %v360 = vmul.f32 %v326, %v355
    %v361 = vmul.f32 %v331, %v357
    %v362 = vlaneseq
    %v363 = vshrl.u32 %v362, 7
    %v364 = vsub.s32 5, %v363
    %v365 = vrot.slane %v54, %v364
    %368 = vrot.lane.b32.xlu0 %v46, 112
    %v369 = vpop.permute.xlu0 %368
    %370 = vrot.lane.b32.xlu0 %v47, 112
    %v371 = vpop.permute.xlu0 %370
    %v375 = vsel %vm78, %v358, 0
    %v378 = vsel %vm78, %v359, 0
    %v381 = vsel %vm78, %v360, 0
    %v384 = vsel %vm78, %v361, 0
    %386 = vmatprep.subr.mxu0 0.0
    %387 = vmatpush1.msra.mxu0 %v369
    %388 = vmatprep.subr.mxu0 0.0
    %389 = vmatpush1.msra.mxu0 %v371
    %390 = vmatprep.subr.mxu0 0.0
    %391 = vmatpush1.msra.mxu0 0.0
    %392 = vmatprep.subr.mxu0 0.0
    %393 = vmatpush1.msra.mxu0 0.0
    %394 = vmatprep.subr.mxu0 0.0
    %395 = vmatpush1.msra.mxu0 0.0
    %396 = vmatprep.subr.mxu0 0.0
    %397 = vmatpush1.msra.mxu0 0.0
    %398 = vmatprep.subr.mxu0 0.0
    %399 = vmatpush1.msra.mxu0 0.0
    %400 = vmatprep.subr.mxu0 0.0
    %401 = vmatpush1.msra.mxu0 0.0
    %402 = vmatprep.subr.mxu0 0.0
    %403 = vmatpush1.msra.mxu0 0.0
    %404 = vmatprep.subr.mxu0 0.0
    %405 = vmatpush1.msra.mxu0 0.0
    %406 = vmatprep.subr.mxu0 0.0
    %407 = vmatpush1.msra.mxu0 0.0
    %408 = vmatprep.subr.mxu0 0.0
    %409 = vmatpush1.msra.mxu0 0.0
    %410 = vmatprep.subr.mxu0 0.0
    %411 = vmatpush1.msra.mxu0 0.0
    %412 = vmatprep.subr.mxu0 0.0
    %413 = vmatpush1.msra.mxu0 0.0
    %414 = vmatprep.subr.mxu0 0.0
    %415 = vmatpush1.msra.mxu0 0.0
    %416 = vmatprep.subr.mxu0 0.0
    %417 = vmatpush1.msra.mxu0 0.0
    %418 = vmatprep.subr.mxu0 0.0
    %419 = vmatpush1.msra.mxu0 0.0
    %420 = vmatprep.subr.mxu0 0.0
    %421 = vmatpush1.msra.mxu0 0.0
    %422 = vmatprep.subr.mxu0 0.0
    %423 = vmatpush1.msra.mxu0 0.0
    %424 = vmatprep.subr.mxu0 0.0
    %425 = vmatpush1.msra.mxu0 0.0
    %426 = vmatprep.subr.mxu0 0.0
    %427 = vmatpush1.msra.mxu0 0.0
    %428 = vmatprep.subr.mxu0 0.0
    %429 = vmatpush1.msra.mxu0 0.0
    %430 = vmatprep.subr.mxu0 0.0
    %431 = vmatpush1.msra.mxu0 0.0
    %432 = vmatprep.subr.mxu0 0.0
    %433 = vmatpush1.msra.mxu0 0.0
    %434 = vmatprep.subr.mxu0 0.0
    %435 = vmatpush1.msra.mxu0 0.0
    %436 = vmatprep.subr.mxu0 0.0
    %437 = vmatpush1.msra.mxu0 0.0
    %438 = vmatprep.subr.mxu0 0.0
    %439 = vmatpush1.msra.mxu0 0.0
    %440 = vmatprep.subr.mxu0 0.0
    %441 = vmatpush1.msra.mxu0 0.0
    %442 = vmatprep.subr.mxu0 0.0
    %443 = vmatpush1.msra.mxu0 0.0
    %444 = vmatprep.subr.mxu0 0.0
    %445 = vmatpush1.msra.mxu0 0.0
    %446 = vmatprep.subr.mxu0 0.0
    %447 = vmatpush1.msra.mxu0 0.0
    %448 = vmatprep.subr.mxu0 0.0
    %449 = vmatpush1.msra.mxu0 0.0
    %450 = vmatprep.mubr.f32.mxu0 0.0
    %451 = vmatmul.mubr.f32.gmra.mrb[0].mxu0 %v375
    %v452 = vpop.f32.mrb[0].mxu0
    %v453 = vadd.f32 %v365, %v452
    %v454 = vpop.f32.mrb[0].mxu0
    %455 = vmatprep.mubr.f32.mxu0 0.0
    %456 = vmatmul.mubr.f32.gmra.mrb[0].mxu0 %v378
    %v457 = vpop.f32.mrb[0].mxu0
    %v458 = vadd.f32 %v365, %v457
    %v459 = vpop.f32.mrb[0].mxu0
    %460 = vmatprep.mubr.f32.mxu0 0.0
    %461 = vmatmul.mubr.f32.gmra.mrb[0].mxu0 %v381
    %v462 = vpop.f32.mrb[0].mxu0
    %v463 = vadd.f32 %v365, %v462
    %v464 = vpop.f32.mrb[0].mxu0
    %465 = vmatprep.mubr.f32.mxu0 0.0
    %466 = vmatmul.mubr.f32.gmra.mrb[0].mxu0 %v384
    %v467 = vpop.f32.mrb[0].mxu0
    %v468 = vadd.f32 %v365, %v467
    %v469 = vpop.f32.mrb[0].mxu0
    %470 = vdwg.mxu0
    %v471 = vsub.f32 0.0, %v453
    %v472 = vsub.f32 0.0, %v458
    %v473 = vsub.f32 0.0, %v463
    %v474 = vsub.f32 0.0, %v468
    %v475 = vmul.f32 %v471, 1.442695
    %v476 = vpow.pop %v475
    %v477 = vmul.f32 %v472, 1.442695
    %v478 = vpow.pop %v477
    %v479 = vmul.f32 %v473, 1.442695
    %v480 = vpow.pop %v479
    %v481 = vmul.f32 %v474, 1.442695
    %v482 = vpow.pop %v481
    %v483 = vadd.f32 %v476, 1.0
    %v484 = vadd.f32 %v478, 1.0
    %v485 = vadd.f32 %v480, 1.0
    %v486 = vadd.f32 %v482, 1.0
    %v487 = vrcp.pop %v483
    %v488 = vmul.f32 1.0, %v487
    %v489 = vrcp.pop %v484
    %v490 = vmul.f32 1.0, %v489
    %v491 = vrcp.pop %v485
    %v492 = vmul.f32 1.0, %v491
    %v493 = vrcp.pop %v486
    %v494 = vmul.f32 1.0, %v493
    %v495 = vmul.f32 %v453, %v488
    %v496 = vmul.f32 %v458, %v490
    %v497 = vmul.f32 %v463, %v492
    %v498 = vmul.f32 %v468, %v494
    %v499 = vlaneseq
    %v500 = vshrl.u32 %v499, 7
    %v501 = vsub.s32 6, %v500
    %v502 = vrot.slane %v54, %v501
    %v503 = vmul.f32 %v495, %v502
    %v504 = vmul.f32 %v496, %v502
    %v505 = vmul.f32 %v497, %v502
    %v506 = vmul.f32 %v498, %v502
    %v507 = vsel %vm78, %v503, 0.0
    %508 = vadd.xlane.f32.xlu0 %v507
    %v509 = vpop.xlane.xlu0 %508
    %v510 = vsel %vm78, %v504, 0.0
    %511 = vadd.xlane.f32.xlu0 %v510
    %v512 = vpop.xlane.xlu0 %511
    %v513 = vsel %vm78, %v505, 0.0
    %514 = vadd.xlane.f32.xlu0 %v513
    %v515 = vpop.xlane.xlu0 %514
    %v516 = vsel %vm78, %v506, 0.0
    %517 = vadd.xlane.f32.xlu0 %v516
    %v518 = vpop.xlane.xlu0 %517
    %v519 = vmul.f32 %v154, %v509
    %v520 = vmul.f32 %v159, %v512
    %v521 = vmul.f32 %v164, %v515
    %v522 = vmul.f32 %v169, %v518
    %525 = vrot.lane.b32.xlu0 %v61, 96
    %v526 = vpop.permute.xlu0 %525
    %527 = vrot.lane.b32.xlu0 %v62, 96
    %v528 = vpop.permute.xlu0 %527
    %vm529 = vcmask 261120
    %v530 = vsel %vm529, %v526, 0
    %v532 = vsel %vm529, %v528, 0
    %534 = vmatprep.subr.mxu0 0.0
    %535 = vmatpush1.msra.mxu0 %v519
    %536 = vmatprep.subr.mxu0 0.0
    %537 = vmatpush1.msra.mxu0 %v520
    %538 = vmatprep.subr.mxu0 0.0
    %539 = vmatpush1.msra.mxu0 %v521
    %540 = vmatprep.subr.mxu0 0.0
    %541 = vmatpush1.msra.mxu0 %v522
    %542 = vmatprep.subr.mxu0 0.0
    %543 = vmatpush1.msra.mxu0 0.0
    %544 = vmatprep.subr.mxu0 0.0
    %545 = vmatpush1.msra.mxu0 0.0
    %546 = vmatprep.subr.mxu0 0.0
    %547 = vmatpush1.msra.mxu0 0.0
    %548 = vmatprep.subr.mxu0 0.0
    %549 = vmatpush1.msra.mxu0 0.0
    %550 = vmatprep.subr.mxu0 0.0
    %551 = vmatpush1.msra.mxu0 0.0
    %552 = vmatprep.subr.mxu0 0.0
    %553 = vmatpush1.msra.mxu0 0.0
    %554 = vmatprep.subr.mxu0 0.0
    %555 = vmatpush1.msra.mxu0 0.0
    %556 = vmatprep.subr.mxu0 0.0
    %557 = vmatpush1.msra.mxu0 0.0
    %558 = vmatprep.subr.mxu0 0.0
    %559 = vmatpush1.msra.mxu0 0.0
    %560 = vmatprep.subr.mxu0 0.0
    %561 = vmatpush1.msra.mxu0 0.0
    %562 = vmatprep.subr.mxu0 0.0
    %563 = vmatpush1.msra.mxu0 0.0
    %564 = vmatprep.subr.mxu0 0.0
    %565 = vmatpush1.msra.mxu0 0.0
    %566 = vmatprep.subr.mxu0 0.0
    %567 = vmatpush1.msra.mxu0 0.0
    %568 = vmatprep.subr.mxu0 0.0
    %569 = vmatpush1.msra.mxu0 0.0
    %570 = vmatprep.subr.mxu0 0.0
    %571 = vmatpush1.msra.mxu0 0.0
    %572 = vmatprep.subr.mxu0 0.0
    %573 = vmatpush1.msra.mxu0 0.0
    %574 = vmatprep.subr.mxu0 0.0
    %575 = vmatpush1.msra.mxu0 0.0
    %576 = vmatprep.subr.mxu0 0.0
    %577 = vmatpush1.msra.mxu0 0.0
    %578 = vmatprep.subr.mxu0 0.0
    %579 = vmatpush1.msra.mxu0 0.0
    %580 = vmatprep.subr.mxu0 0.0
    %581 = vmatpush1.msra.mxu0 0.0
    %582 = vmatprep.subr.mxu0 0.0
    %583 = vmatpush1.msra.mxu0 0.0
    %584 = vmatprep.subr.mxu0 0.0
    %585 = vmatpush1.msra.mxu0 0.0
    %586 = vmatprep.subr.mxu0 0.0
    %587 = vmatpush1.msra.mxu0 0.0
    %588 = vmatprep.subr.mxu0 0.0
    %589 = vmatpush1.msra.mxu0 0.0
    %590 = vmatprep.subr.mxu0 0.0
    %591 = vmatpush1.msra.mxu0 0.0
    %592 = vmatprep.subr.mxu0 0.0
    %593 = vmatpush1.msra.mxu0 0.0
    %594 = vmatprep.subr.mxu0 0.0
    %595 = vmatpush1.msra.mxu0 0.0
    %596 = vmatprep.subr.mxu0 0.0
    %597 = vmatpush1.msra.mxu0 0.0
    %598 = vmatprep.mubr.f32.mxu0 0.0
    %599 = vmatmul.mubr.f32.gmra.mrb[0].mxu0 %v530
    %v600 = vpop.f32.mrb[0].mxu0
    %v601 = vadd.f32 0.0, %v600
    %v602 = vpop.f32.mrb[0].mxu0
    %603 = vmatprep.mubr.f32.mxu0 0.0
    %604 = vmatmul.mubr.f32.gmra.mrb[0].mxu0 %v532
    %v605 = vpop.f32.mrb[0].mxu0
    %v606 = vadd.f32 0.0, %v605
    %v607 = vpop.f32.mrb[0].mxu0
    %608 = vdwg.mxu0
    %v609 = vadd.f32 %v63, %v601
    %v610 = vadd.f32 %v64, %v606
    %v611 = vsel %vm529, %v61, 0
    %v613 = vsel %vm529, %v62, 0
    %615 = vmatprep.subr.mxu0 0.0
    %616 = vmatpush1.msra.mxu0 %v358
    %617 = vmatprep.subr.mxu0 0.0
    %618 = vmatpush1.msra.mxu0 %v359
    %619 = vmatprep.subr.mxu0 0.0
    %620 = vmatpush1.msra.mxu0 %v360
    %621 = vmatprep.subr.mxu0 0.0
    %622 = vmatpush1.msra.mxu0 %v361
    %623 = vmatprep.subr.mxu0 0.0
    %624 = vmatpush1.msra.mxu0 0.0
    %625 = vmatprep.subr.mxu0 0.0
    %626 = vmatpush1.msra.mxu0 0.0
    %627 = vmatprep.subr.mxu0 0.0
    %628 = vmatpush1.msra.mxu0 0.0
    %629 = vmatprep.subr.mxu0 0.0
    %630 = vmatpush1.msra.mxu0 0.0
    %631 = vmatprep.subr.mxu0 0.0
    %632 = vmatpush1.msra.mxu0 0.0
    %633 = vmatprep.subr.mxu0 0.0
    %634 = vmatpush1.msra.mxu0 0.0
    %635 = vmatprep.subr.mxu0 0.0
    %636 = vmatpush1.msra.mxu0 0.0
    %637 = vmatprep.subr.mxu0 0.0
    %638 = vmatpush1.msra.mxu0 0.0
    %639 = vmatprep.subr.mxu0 0.0
    %640 = vmatpush1.msra.mxu0 0.0
    %641 = vmatprep.subr.mxu0 0.0
    %642 = vmatpush1.msra.mxu0 0.0
    %643 = vmatprep.subr.mxu0 0.0
    %644 = vmatpush1.msra.mxu0 0.0
    %645 = vmatprep.subr.mxu0 0.0
    %646 = vmatpush1.msra.mxu0 0.0
    %647 = vmatprep.subr.mxu0 0.0
    %648 = vmatpush1.msra.mxu0 0.0
    %649 = vmatprep.subr.mxu0 0.0
    %650 = vmatpush1.msra.mxu0 0.0
    %651 = vmatprep.subr.mxu0 0.0
    %652 = vmatpush1.msra.mxu0 0.0
    %653 = vmatprep.subr.mxu0 0.0
    %654 = vmatpush1.msra.mxu0 0.0
    %655 = vmatprep.subr.mxu0 0.0
    %656 = vmatpush1.msra.mxu0 0.0
    %657 = vmatprep.subr.mxu0 0.0
    %658 = vmatpush1.msra.mxu0 0.0
    %659 = vmatprep.subr.mxu0 0.0
    %660 = vmatpush1.msra.mxu0 0.0
    %661 = vmatprep.subr.mxu0 0.0
    %662 = vmatpush1.msra.mxu0 0.0
    %663 = vmatprep.subr.mxu0 0.0
    %664 = vmatpush1.msra.mxu0 0.0
    %665 = vmatprep.subr.mxu0 0.0
    %666 = vmatpush1.msra.mxu0 0.0
    %667 = vmatprep.subr.mxu0 0.0
    %668 = vmatpush1.msra.mxu0 0.0
    %669 = vmatprep.subr.mxu0 0.0
    %670 = vmatpush1.msra.mxu0 0.0
    %671 = vmatprep.subr.mxu0 0.0
    %672 = vmatpush1.msra.mxu0 0.0
    %673 = vmatprep.subr.mxu0 0.0
    %674 = vmatpush1.msra.mxu0 0.0
    %675 = vmatprep.subr.mxu0 0.0
    %676 = vmatpush1.msra.mxu0 0.0
    %677 = vmatprep.subr.mxu0 0.0
    %678 = vmatpush1.msra.mxu0 0.0
    %679 = vmatprep.mubr.f32.mxu0 0.0
    %680 = vmatmul.mubr.f32.gmra.mrb[0].mxu0 %v611
    %v681 = vpop.f32.mrb[0].mxu0
    %v682 = vadd.f32 0.0, %v681
    %v683 = vpop.f32.mrb[0].mxu0
    %684 = vmatprep.mubr.f32.mxu0 0.0
    %685 = vmatmul.mubr.f32.gmra.mrb[0].mxu0 %v613
    %v686 = vpop.f32.mrb[0].mxu0
    %v687 = vadd.f32 0.0, %v686
    %v688 = vpop.f32.mrb[0].mxu0
    %689 = vdwg.mxu0
    %v690 = vlaneseq
    %v691 = vshrl.u32 %v690, 7
    %v692 = vsub.s32 3, %v691
    %v693 = vrot.slane %v54, %v692
    %694 = vrot.lane.b32.xlu0 %v46, 96
    %v695 = vpop.permute.xlu0 %694
    %696 = vrot.lane.b32.xlu0 %v47, 96
    %v697 = vpop.permute.xlu0 %696
    %v701 = vsel %vm78, %v682, 0
    %v704 = vsel %vm78, %v687, 0
    %706 = vmatprep.subr.mxu0 0.0
    %707 = vmatpush1.msra.mxu0 %v695
    %708 = vmatprep.subr.mxu0 0.0
    %709 = vmatpush1.msra.mxu0 %v697
    %710 = vmatprep.subr.mxu0 0.0
    %711 = vmatpush1.msra.mxu0 0.0
    %712 = vmatprep.subr.mxu0 0.0
    %713 = vmatpush1.msra.mxu0 0.0
    %714 = vmatprep.subr.mxu0 0.0
    %715 = vmatpush1.msra.mxu0 0.0
    %716 = vmatprep.subr.mxu0 0.0
    %717 = vmatpush1.msra.mxu0 0.0
    %718 = vmatprep.subr.mxu0 0.0
    %719 = vmatpush1.msra.mxu0 0.0
    %720 = vmatprep.subr.mxu0 0.0
    %721 = vmatpush1.msra.mxu0 0.0
    %722 = vmatprep.subr.mxu0 0.0
    %723 = vmatpush1.msra.mxu0 0.0
    %724 = vmatprep.subr.mxu0 0.0
    %725 = vmatpush1.msra.mxu0 0.0
    %726 = vmatprep.subr.mxu0 0.0
    %727 = vmatpush1.msra.mxu0 0.0
    %728 = vmatprep.subr.mxu0 0.0
    %729 = vmatpush1.msra.mxu0 0.0
    %730 = vmatprep.subr.mxu0 0.0
    %731 = vmatpush1.msra.mxu0 0.0
    %732 = vmatprep.subr.mxu0 0.0
    %733 = vmatpush1.msra.mxu0 0.0
    %734 = vmatprep.subr.mxu0 0.0
    %735 = vmatpush1.msra.mxu0 0.0
    %736 = vmatprep.subr.mxu0 0.0
    %737 = vmatpush1.msra.mxu0 0.0
    %738 = vmatprep.subr.mxu0 0.0
    %739 = vmatpush1.msra.mxu0 0.0
    %740 = vmatprep.subr.mxu0 0.0
    %741 = vmatpush1.msra.mxu0 0.0
    %742 = vmatprep.subr.mxu0 0.0
    %743 = vmatpush1.msra.mxu0 0.0
    %744 = vmatprep.subr.mxu0 0.0
    %745 = vmatpush1.msra.mxu0 0.0
    %746 = vmatprep.subr.mxu0 0.0
    %747 = vmatpush1.msra.mxu0 0.0
    %748 = vmatprep.subr.mxu0 0.0
    %749 = vmatpush1.msra.mxu0 0.0
    %750 = vmatprep.subr.mxu0 0.0
    %751 = vmatpush1.msra.mxu0 0.0
    %752 = vmatprep.subr.mxu0 0.0
    %753 = vmatpush1.msra.mxu0 0.0
    %754 = vmatprep.subr.mxu0 0.0
    %755 = vmatpush1.msra.mxu0 0.0
    %756 = vmatprep.subr.mxu0 0.0
    %757 = vmatpush1.msra.mxu0 0.0
    %758 = vmatprep.subr.mxu0 0.0
    %759 = vmatpush1.msra.mxu0 0.0
    %760 = vmatprep.subr.mxu0 0.0
    %761 = vmatpush1.msra.mxu0 0.0
    %762 = vmatprep.subr.mxu0 0.0
    %763 = vmatpush1.msra.mxu0 0.0
    %764 = vmatprep.subr.mxu0 0.0
    %765 = vmatpush1.msra.mxu0 0.0
    %766 = vmatprep.subr.mxu0 0.0
    %767 = vmatpush1.msra.mxu0 0.0
    %768 = vmatprep.subr.mxu0 0.0
    %769 = vmatpush1.msra.mxu0 0.0
    %770 = vmatprep.mubr.f32.mxu0 0.0
    %771 = vmatmul.mubr.f32.gmra.mrb[0].mxu0 %v701
    %v772 = vpop.f32.mrb[0].mxu0
    %v773 = vadd.f32 %v693, %v772
    %v774 = vpop.f32.mrb[0].mxu0
    %775 = vmatprep.mubr.f32.mxu0 0.0
    %776 = vmatmul.mubr.f32.gmra.mrb[0].mxu0 %v704
    %v777 = vpop.f32.mrb[0].mxu0
    %v778 = vadd.f32 %v693, %v777
    %v779 = vpop.f32.mrb[0].mxu0
    %780 = vdwg.mxu0
    %v781 = vsub.f32 0.0, %v773
    %v782 = vsub.f32 0.0, %v778
    %v783 = vmul.f32 %v781, 1.442695
    %v784 = vpow.pop %v783
    %v785 = vmul.f32 %v782, 1.442695
    %v786 = vpow.pop %v785
    %v787 = vadd.f32 %v784, 1.0
    %v788 = vadd.f32 %v786, 1.0
    %v789 = vrcp.pop %v787
    %v790 = vmul.f32 1.0, %v789
    %v791 = vrcp.pop %v788
    %v792 = vmul.f32 1.0, %v791
    %v793 = vmul.f32 %v773, %v790
    %v794 = vmul.f32 %v778, %v792
    %v795 = vlaneseq
    %v796 = vshrl.u32 %v795, 7
    %v797 = vsub.s32 4, %v796
    %v798 = vrot.slane %v54, %v797
    %799 = vrot.lane.b32.xlu0 %v46, 80
    %v800 = vpop.permute.xlu0 %799
    %801 = vrot.lane.b32.xlu0 %v47, 80
    %v802 = vpop.permute.xlu0 %801
    %v806 = vsel %vm78, %v793, 0
    %v809 = vsel %vm78, %v794, 0
    %811 = vmatprep.subr.mxu0 0.0
    %812 = vmatpush1.msra.mxu0 %v800
    %813 = vmatprep.subr.mxu0 0.0
    %814 = vmatpush1.msra.mxu0 %v802
    %815 = vmatprep.subr.mxu0 0.0
    %816 = vmatpush1.msra.mxu0 0.0
    %817 = vmatprep.subr.mxu0 0.0
    %818 = vmatpush1.msra.mxu0 0.0
    %819 = vmatprep.subr.mxu0 0.0
    %820 = vmatpush1.msra.mxu0 0.0
    %821 = vmatprep.subr.mxu0 0.0
    %822 = vmatpush1.msra.mxu0 0.0
    %823 = vmatprep.subr.mxu0 0.0
    %824 = vmatpush1.msra.mxu0 0.0
    %825 = vmatprep.subr.mxu0 0.0
    %826 = vmatpush1.msra.mxu0 0.0
    %827 = vmatprep.subr.mxu0 0.0
    %828 = vmatpush1.msra.mxu0 0.0
    %829 = vmatprep.subr.mxu0 0.0
    %830 = vmatpush1.msra.mxu0 0.0
    %831 = vmatprep.subr.mxu0 0.0
    %832 = vmatpush1.msra.mxu0 0.0
    %833 = vmatprep.subr.mxu0 0.0
    %834 = vmatpush1.msra.mxu0 0.0
    %835 = vmatprep.subr.mxu0 0.0
    %836 = vmatpush1.msra.mxu0 0.0
    %837 = vmatprep.subr.mxu0 0.0
    %838 = vmatpush1.msra.mxu0 0.0
    %839 = vmatprep.subr.mxu0 0.0
    %840 = vmatpush1.msra.mxu0 0.0
    %841 = vmatprep.subr.mxu0 0.0
    %842 = vmatpush1.msra.mxu0 0.0
    %843 = vmatprep.subr.mxu0 0.0
    %844 = vmatpush1.msra.mxu0 0.0
    %845 = vmatprep.subr.mxu0 0.0
    %846 = vmatpush1.msra.mxu0 0.0
    %847 = vmatprep.subr.mxu0 0.0
    %848 = vmatpush1.msra.mxu0 0.0
    %849 = vmatprep.subr.mxu0 0.0
    %850 = vmatpush1.msra.mxu0 0.0
    %851 = vmatprep.subr.mxu0 0.0
    %852 = vmatpush1.msra.mxu0 0.0
    %853 = vmatprep.subr.mxu0 0.0
    %854 = vmatpush1.msra.mxu0 0.0
    %855 = vmatprep.subr.mxu0 0.0
    %856 = vmatpush1.msra.mxu0 0.0
    %857 = vmatprep.subr.mxu0 0.0
    %858 = vmatpush1.msra.mxu0 0.0
    %859 = vmatprep.subr.mxu0 0.0
    %860 = vmatpush1.msra.mxu0 0.0
    %861 = vmatprep.subr.mxu0 0.0
    %862 = vmatpush1.msra.mxu0 0.0
    %863 = vmatprep.subr.mxu0 0.0
    %864 = vmatpush1.msra.mxu0 0.0
    %865 = vmatprep.subr.mxu0 0.0
    %866 = vmatpush1.msra.mxu0 0.0
    %867 = vmatprep.subr.mxu0 0.0
    %868 = vmatpush1.msra.mxu0 0.0
    %869 = vmatprep.subr.mxu0 0.0
    %870 = vmatpush1.msra.mxu0 0.0
    %871 = vmatprep.subr.mxu0 0.0
    %872 = vmatpush1.msra.mxu0 0.0
    %873 = vmatprep.subr.mxu0 0.0
    %874 = vmatpush1.msra.mxu0 0.0
    %875 = vmatprep.mubr.f32.mxu0 0.0
    %876 = vmatmul.mubr.f32.gmra.mrb[0].mxu0 %v806
    %v877 = vpop.f32.mrb[0].mxu0
    %v878 = vadd.f32 %v798, %v877
    %v879 = vpop.f32.mrb[0].mxu0
    %880 = vmatprep.mubr.f32.mxu0 0.0
    %881 = vmatmul.mubr.f32.gmra.mrb[0].mxu0 %v809
    %v882 = vpop.f32.mrb[0].mxu0
    %v883 = vadd.f32 %v798, %v882
    %v884 = vpop.f32.mrb[0].mxu0
    %885 = vdwg.mxu0
    %886 = vmatprep.subr.mxu0 0.0
    %887 = vmatpush1.msra.mxu0 %v609
    %888 = vmatprep.subr.mxu0 0.0
    %889 = vmatpush1.msra.mxu0 %v610
    %890 = vmatprep.subr.mxu0 0.0
    %891 = vmatpush1.msra.mxu0 0.0
    %892 = vmatprep.subr.mxu0 0.0
    %893 = vmatpush1.msra.mxu0 0.0
    %894 = vmatprep.subr.mxu0 0.0
    %895 = vmatpush1.msra.mxu0 0.0
    %896 = vmatprep.subr.mxu0 0.0
    %897 = vmatpush1.msra.mxu0 0.0
    %898 = vmatprep.subr.mxu0 0.0
    %899 = vmatpush1.msra.mxu0 0.0
    %900 = vmatprep.subr.mxu0 0.0
    %901 = vmatpush1.msra.mxu0 0.0
    %902 = vmatprep.subr.mxu0 0.0
    %903 = vmatpush1.msra.mxu0 0.0
    %904 = vmatprep.subr.mxu0 0.0
    %905 = vmatpush1.msra.mxu0 0.0
    %906 = vmatprep.subr.mxu0 0.0
    %907 = vmatpush1.msra.mxu0 0.0
    %908 = vmatprep.subr.mxu0 0.0
    %909 = vmatpush1.msra.mxu0 0.0
    %910 = vmatprep.subr.mxu0 0.0
    %911 = vmatpush1.msra.mxu0 0.0
    %912 = vmatprep.subr.mxu0 0.0
    %913 = vmatpush1.msra.mxu0 0.0
    %914 = vmatprep.subr.mxu0 0.0
    %915 = vmatpush1.msra.mxu0 0.0
    %916 = vmatprep.subr.mxu0 0.0
    %917 = vmatpush1.msra.mxu0 0.0
    %918 = vmatprep.subr.mxu0 0.0
    %919 = vmatpush1.msra.mxu0 0.0
    %920 = vmatprep.subr.mxu0 0.0
    %921 = vmatpush1.msra.mxu0 0.0
    %922 = vmatprep.subr.mxu0 0.0
    %923 = vmatpush1.msra.mxu0 0.0
    %924 = vmatprep.subr.mxu0 0.0
    %925 = vmatpush1.msra.mxu0 0.0
    %926 = vmatprep.subr.mxu0 0.0
    %927 = vmatpush1.msra.mxu0 0.0
    %928 = vmatprep.subr.mxu0 0.0
    %929 = vmatpush1.msra.mxu0 0.0
    %930 = vmatprep.subr.mxu0 0.0
    %931 = vmatpush1.msra.mxu0 0.0
    %932 = vmatprep.subr.mxu0 0.0
    %933 = vmatpush1.msra.mxu0 0.0
    %934 = vmatprep.subr.mxu0 0.0
    %935 = vmatpush1.msra.mxu0 0.0
    %936 = vmatprep.subr.mxu0 0.0
    %937 = vmatpush1.msra.mxu0 0.0
    %938 = vmatprep.subr.mxu0 0.0
    %939 = vmatpush1.msra.mxu0 0.0
    %940 = vmatprep.subr.mxu0 0.0
    %941 = vmatpush1.msra.mxu0 0.0
    %942 = vmatprep.subr.mxu0 0.0
    %943 = vmatpush1.msra.mxu0 0.0
    %944 = vmatprep.subr.mxu0 0.0
    %945 = vmatpush1.msra.mxu0 0.0
    %946 = vmatprep.subr.mxu0 0.0
    %947 = vmatpush1.msra.mxu0 0.0
    %948 = vmatprep.subr.mxu0 0.0
    %949 = vmatpush1.msra.mxu0 0.0
    %950 = vmatprep.mubr.f32.mxu0 0.0
    %951 = vmatmul.mubr.f32.gmra.mrb[0].mxu0 %v79
    %v952 = vpop.f32.mrb[0].mxu0
    %v953 = vadd.f32 0.0, %v952
    %v954 = vpop.f32.mrb[0].mxu0
    %955 = vmatprep.mubr.f32.mxu0 0.0
    %956 = vmatmul.mubr.f32.gmra.mrb[0].mxu0 %v81
    %v957 = vpop.f32.mrb[0].mxu0
    %v958 = vadd.f32 0.0, %v957
    %v959 = vpop.f32.mrb[0].mxu0
    %960 = vmatprep.mubr.f32.mxu0 0.0
    %961 = vmatmul.mubr.f32.gmra.mrb[0].mxu0 %v83
    %v962 = vpop.f32.mrb[0].mxu0
    %v963 = vadd.f32 0.0, %v962
    %v964 = vpop.f32.mrb[0].mxu0
    %965 = vmatprep.mubr.f32.mxu0 0.0
    %966 = vmatmul.mubr.f32.gmra.mrb[0].mxu0 %v85
    %v967 = vpop.f32.mrb[0].mxu0
    %v968 = vadd.f32 0.0, %v967
    %v969 = vpop.f32.mrb[0].mxu0
    %970 = vdwg.mxu0
    %v971 = vmul.f32 %v953, %v953
    %v972 = vmul.f32 %v958, %v958
    %v973 = vmul.f32 %v963, %v963
    %v974 = vmul.f32 %v968, %v968
    %v975 = vsel %vm176, %v971, 0.0
    %976 = vadd.xlane.f32.xlu0 %v975
    %v977 = vpop.xlane.xlu0 %976
    %v978 = vsel %vm176, %v972, 0.0
    %979 = vadd.xlane.f32.xlu0 %v978
    %v980 = vpop.xlane.xlu0 %979
    %v981 = vsel %vm176, %v973, 0.0
    %982 = vadd.xlane.f32.xlu0 %v981
    %v983 = vpop.xlane.xlu0 %982
    %v984 = vsel %vm176, %v974, 0.0
    %985 = vadd.xlane.f32.xlu0 %v984
    %v986 = vpop.xlane.xlu0 %985
    %987 = vrot.lane.b32.xlu0 %v46, 32
    %v988 = vpop.permute.xlu0 %987
    %989 = vrot.lane.b32.xlu0 %v47, 32
    %v990 = vpop.permute.xlu0 %989
    %v994 = vsel %vm78, %v878, 0
    %v997 = vsel %vm78, %v883, 0
    %999 = vmatprep.subr.mxu0 0.0
    %1000 = vmatpush1.msra.mxu0 %v988
    %1001 = vmatprep.subr.mxu0 0.0
    %1002 = vmatpush1.msra.mxu0 %v990
    %1003 = vmatprep.subr.mxu0 0.0
    %1004 = vmatpush1.msra.mxu0 0.0
    %1005 = vmatprep.subr.mxu0 0.0
    %1006 = vmatpush1.msra.mxu0 0.0
    %1007 = vmatprep.subr.mxu0 0.0
    %1008 = vmatpush1.msra.mxu0 0.0
    %1009 = vmatprep.subr.mxu0 0.0
    %1010 = vmatpush1.msra.mxu0 0.0
    %1011 = vmatprep.subr.mxu0 0.0
    %1012 = vmatpush1.msra.mxu0 0.0
    %1013 = vmatprep.subr.mxu0 0.0
    %1014 = vmatpush1.msra.mxu0 0.0
    %1015 = vmatprep.subr.mxu0 0.0
    %1016 = vmatpush1.msra.mxu0 0.0
    %1017 = vmatprep.subr.mxu0 0.0
    %1018 = vmatpush1.msra.mxu0 0.0
    %1019 = vmatprep.subr.mxu0 0.0
    %1020 = vmatpush1.msra.mxu0 0.0
    %1021 = vmatprep.subr.mxu0 0.0
    %1022 = vmatpush1.msra.mxu0 0.0
    %1023 = vmatprep.subr.mxu0 0.0
    %1024 = vmatpush1.msra.mxu0 0.0
    %1025 = vmatprep.subr.mxu0 0.0
    %1026 = vmatpush1.msra.mxu0 0.0
    %1027 = vmatprep.subr.mxu0 0.0
    %1028 = vmatpush1.msra.mxu0 0.0
    %1029 = vmatprep.subr.mxu0 0.0
    %1030 = vmatpush1.msra.mxu0 0.0
    %1031 = vmatprep.subr.mxu0 0.0
    %1032 = vmatpush1.msra.mxu0 0.0
    %1033 = vmatprep.subr.mxu0 0.0
    %1034 = vmatpush1.msra.mxu0 0.0
    %1035 = vmatprep.subr.mxu0 0.0
    %1036 = vmatpush1.msra.mxu0 0.0
    %1037 = vmatprep.subr.mxu0 0.0
    %1038 = vmatpush1.msra.mxu0 0.0
    %1039 = vmatprep.subr.mxu0 0.0
    %1040 = vmatpush1.msra.mxu0 0.0
    %1041 = vmatprep.subr.mxu0 0.0
    %1042 = vmatpush1.msra.mxu0 0.0
    %1043 = vmatprep.subr.mxu0 0.0
    %1044 = vmatpush1.msra.mxu0 0.0
    %1045 = vmatprep.subr.mxu0 0.0
    %1046 = vmatpush1.msra.mxu0 0.0
    %1047 = vmatprep.subr.mxu0 0.0
    %1048 = vmatpush1.msra.mxu0 0.0
    %1049 = vmatprep.subr.mxu0 0.0
    %1050 = vmatpush1.msra.mxu0 0.0
    %1051 = vmatprep.subr.mxu0 0.0
    %1052 = vmatpush1.msra.mxu0 0.0
    %1053 = vmatprep.subr.mxu0 0.0
    %1054 = vmatpush1.msra.mxu0 0.0
    %1055 = vmatprep.subr.mxu0 0.0
    %1056 = vmatpush1.msra.mxu0 0.0
    %1057 = vmatprep.subr.mxu0 0.0
    %1058 = vmatpush1.msra.mxu0 0.0
    %1059 = vmatprep.subr.mxu0 0.0
    %1060 = vmatpush1.msra.mxu0 0.0
    %1061 = vmatprep.subr.mxu0 0.0
    %1062 = vmatpush1.msra.mxu0 0.0
    %1063 = vmatprep.mubr.f32.mxu0 0.0
    %1064 = vmatmul.mubr.f32.gmra.mrb[0].mxu0 %v994
    %v1065 = vpop.f32.mrb[0].mxu0
    %v1066 = vadd.f32 0.0, %v1065
    %v1067 = vpop.f32.mrb[0].mxu0
    %1068 = vmatprep.mubr.f32.mxu0 0.0
    %1069 = vmatmul.mubr.f32.gmra.mrb[0].mxu0 %v997
    %v1070 = vpop.f32.mrb[0].mxu0
    %v1071 = vadd.f32 0.0, %v1070
    %v1072 = vpop.f32.mrb[0].mxu0
    %1073 = vdwg.mxu0
    %1074 = vrot.lane.b32.xlu0 %v57, 112
    %v1075 = vpop.permute.xlu0 %1074
    %1076 = vrot.lane.b32.xlu0 %v58, 112
    %v1077 = vpop.permute.xlu0 %1076
    %1078 = vrot.lane.b32.xlu0 %v59, 112
    %v1079 = vpop.permute.xlu0 %1078
    %1080 = vrot.lane.b32.xlu0 %v60, 112
    %v1081 = vpop.permute.xlu0 %1080
    %1084 = vrot.lane.b32.xlu0 %v1066, 112
    %v1085 = vpop.permute.xlu0 %1084
    %1086 = vrot.lane.b32.xlu0 %v1071, 112
    %v1087 = vpop.permute.xlu0 %1086
    %v1090 = vsel %vm78, %v1075, 0
    %v1092 = vsel %vm78, %v1077, 0
    %v1094 = vsel %vm78, %v1079, 0
    %v1096 = vsel %vm78, %v1081, 0
    %1098 = vmatprep.subr.mxu0 0.0
    %1099 = vmatpush1.msra.mxu0 %v1085
    %1100 = vmatprep.subr.mxu0 0.0
    %1101 = vmatpush1.msra.mxu0 %v1087
    %1102 = vmatprep.subr.mxu0 0.0
    %1103 = vmatpush1.msra.mxu0 0.0
    %1104 = vmatprep.subr.mxu0 0.0
    %1105 = vmatpush1.msra.mxu0 0.0
    %1106 = vmatprep.subr.mxu0 0.0
    %1107 = vmatpush1.msra.mxu0 0.0
    %1108 = vmatprep.subr.mxu0 0.0
    %1109 = vmatpush1.msra.mxu0 0.0
    %1110 = vmatprep.subr.mxu0 0.0
    %1111 = vmatpush1.msra.mxu0 0.0
    %1112 = vmatprep.subr.mxu0 0.0
    %1113 = vmatpush1.msra.mxu0 0.0
    %1114 = vmatprep.subr.mxu0 0.0
    %1115 = vmatpush1.msra.mxu0 0.0
    %1116 = vmatprep.subr.mxu0 0.0
    %1117 = vmatpush1.msra.mxu0 0.0
    %1118 = vmatprep.subr.mxu0 0.0
    %1119 = vmatpush1.msra.mxu0 0.0
    %1120 = vmatprep.subr.mxu0 0.0
    %1121 = vmatpush1.msra.mxu0 0.0
    %1122 = vmatprep.subr.mxu0 0.0
    %1123 = vmatpush1.msra.mxu0 0.0
    %1124 = vmatprep.subr.mxu0 0.0
    %1125 = vmatpush1.msra.mxu0 0.0
    %1126 = vmatprep.subr.mxu0 0.0
    %1127 = vmatpush1.msra.mxu0 0.0
    %1128 = vmatprep.subr.mxu0 0.0
    %1129 = vmatpush1.msra.mxu0 0.0
    %1130 = vmatprep.subr.mxu0 0.0
    %1131 = vmatpush1.msra.mxu0 0.0
    %1132 = vmatprep.subr.mxu0 0.0
    %1133 = vmatpush1.msra.mxu0 0.0
    %1134 = vmatprep.subr.mxu0 0.0
    %1135 = vmatpush1.msra.mxu0 0.0
    %1136 = vmatprep.subr.mxu0 0.0
    %1137 = vmatpush1.msra.mxu0 0.0
    %1138 = vmatprep.subr.mxu0 0.0
    %1139 = vmatpush1.msra.mxu0 0.0
    %1140 = vmatprep.subr.mxu0 0.0
    %1141 = vmatpush1.msra.mxu0 0.0
    %1142 = vmatprep.subr.mxu0 0.0
    %1143 = vmatpush1.msra.mxu0 0.0
    %1144 = vmatprep.subr.mxu0 0.0
    %1145 = vmatpush1.msra.mxu0 0.0
    %1146 = vmatprep.subr.mxu0 0.0
    %1147 = vmatpush1.msra.mxu0 0.0
    %1148 = vmatprep.subr.mxu0 0.0
    %1149 = vmatpush1.msra.mxu0 0.0
    %1150 = vmatprep.subr.mxu0 0.0
    %1151 = vmatpush1.msra.mxu0 0.0
    %1152 = vmatprep.subr.mxu0 0.0
    %1153 = vmatpush1.msra.mxu0 0.0
    %1154 = vmatprep.subr.mxu0 0.0
    %1155 = vmatpush1.msra.mxu0 0.0
    %1156 = vmatprep.subr.mxu0 0.0
    %1157 = vmatpush1.msra.mxu0 0.0
    %1158 = vmatprep.subr.mxu0 0.0
    %1159 = vmatpush1.msra.mxu0 0.0
    %1160 = vmatprep.subr.mxu0 0.0
    %1161 = vmatpush1.msra.mxu0 0.0
    %1162 = vmatprep.mubr.f32.mxu0 0.0
    %1163 = vmatmul.mubr.f32.gmra.mrb[0].mxu0 %v1090
    %v1164 = vpop.f32.mrb[0].mxu0
    %v1165 = vadd.f32 0.0, %v1164
    %v1166 = vpop.f32.mrb[0].mxu0
    %1167 = vmatprep.mubr.f32.mxu0 0.0
    %1168 = vmatmul.mubr.f32.gmra.mrb[0].mxu0 %v1092
    %v1169 = vpop.f32.mrb[0].mxu0
    %v1170 = vadd.f32 0.0, %v1169
    %v1171 = vpop.f32.mrb[0].mxu0
    %1172 = vmatprep.mubr.f32.mxu0 0.0
    %1173 = vmatmul.mubr.f32.gmra.mrb[0].mxu0 %v1094
    %v1174 = vpop.f32.mrb[0].mxu0
    %v1175 = vadd.f32 0.0, %v1174
    %v1176 = vpop.f32.mrb[0].mxu0
    %1177 = vmatprep.mubr.f32.mxu0 0.0
    %1178 = vmatmul.mubr.f32.gmra.mrb[0].mxu0 %v1096
    %v1179 = vpop.f32.mrb[0].mxu0
    %v1180 = vadd.f32 0.0, %v1179
    %v1181 = vpop.f32.mrb[0].mxu0
    %1182 = vdwg.mxu0
    %v1183 = vsel %vm78, %v57, 0
    %v1185 = vsel %vm78, %v58, 0
    %v1187 = vsel %vm78, %v59, 0
    %v1189 = vsel %vm78, %v60, 0
    %1191 = vmatprep.subr.mxu0 0.0
    %1192 = vmatpush1.msra.mxu0 %v1066
    %1193 = vmatprep.subr.mxu0 0.0
    %1194 = vmatpush1.msra.mxu0 %v1071
    %1195 = vmatprep.subr.mxu0 0.0
    %1196 = vmatpush1.msra.mxu0 0.0
    %1197 = vmatprep.subr.mxu0 0.0
    %1198 = vmatpush1.msra.mxu0 0.0
    %1199 = vmatprep.subr.mxu0 0.0
    %1200 = vmatpush1.msra.mxu0 0.0
    %1201 = vmatprep.subr.mxu0 0.0
    %1202 = vmatpush1.msra.mxu0 0.0
    %1203 = vmatprep.subr.mxu0 0.0
    %1204 = vmatpush1.msra.mxu0 0.0
    %1205 = vmatprep.subr.mxu0 0.0
    %1206 = vmatpush1.msra.mxu0 0.0
    %1207 = vmatprep.subr.mxu0 0.0
    %1208 = vmatpush1.msra.mxu0 0.0
    %1209 = vmatprep.subr.mxu0 0.0
    %1210 = vmatpush1.msra.mxu0 0.0
    %1211 = vmatprep.subr.mxu0 0.0
    %1212 = vmatpush1.msra.mxu0 0.0
    %1213 = vmatprep.subr.mxu0 0.0
    %1214 = vmatpush1.msra.mxu0 0.0
    %1215 = vmatprep.subr.mxu0 0.0
    %1216 = vmatpush1.msra.mxu0 0.0
    %1217 = vmatprep.subr.mxu0 0.0
    %1218 = vmatpush1.msra.mxu0 0.0
    %1219 = vmatprep.subr.mxu0 0.0
    %1220 = vmatpush1.msra.mxu0 0.0
    %1221 = vmatprep.subr.mxu0 0.0
    %1222 = vmatpush1.msra.mxu0 0.0
    %1223 = vmatprep.subr.mxu0 0.0
    %1224 = vmatpush1.msra.mxu0 0.0
    %1225 = vmatprep.subr.mxu0 0.0
    %1226 = vmatpush1.msra.mxu0 0.0
    %1227 = vmatprep.subr.mxu0 0.0
    %1228 = vmatpush1.msra.mxu0 0.0
    %1229 = vmatprep.subr.mxu0 0.0
    %1230 = vmatpush1.msra.mxu0 0.0
    %1231 = vmatprep.subr.mxu0 0.0
    %1232 = vmatpush1.msra.mxu0 0.0
    %1233 = vmatprep.subr.mxu0 0.0
    %1234 = vmatpush1.msra.mxu0 0.0
    %1235 = vmatprep.subr.mxu0 0.0
    %1236 = vmatpush1.msra.mxu0 0.0
    %1237 = vmatprep.subr.mxu0 0.0
    %1238 = vmatpush1.msra.mxu0 0.0
    %1239 = vmatprep.subr.mxu0 0.0
    %1240 = vmatpush1.msra.mxu0 0.0
    %1241 = vmatprep.subr.mxu0 0.0
    %1242 = vmatpush1.msra.mxu0 0.0
    %1243 = vmatprep.subr.mxu0 0.0
    %1244 = vmatpush1.msra.mxu0 0.0
    %1245 = vmatprep.subr.mxu0 0.0
    %1246 = vmatpush1.msra.mxu0 0.0
    %1247 = vmatprep.subr.mxu0 0.0
    %1248 = vmatpush1.msra.mxu0 0.0
    %1249 = vmatprep.subr.mxu0 0.0
    %1250 = vmatpush1.msra.mxu0 0.0
    %1251 = vmatprep.subr.mxu0 0.0
    %1252 = vmatpush1.msra.mxu0 0.0
    %1253 = vmatprep.subr.mxu0 0.0
    %1254 = vmatpush1.msra.mxu0 0.0
    %1255 = vmatprep.mubr.f32.mxu0 0.0
    %1256 = vmatmul.mubr.f32.gmra.mrb[0].mxu0 %v1183
    %v1257 = vpop.f32.mrb[0].mxu0
    %v1258 = vadd.f32 %v1165, %v1257
    %v1259 = vpop.f32.mrb[0].mxu0
    %1260 = vmatprep.mubr.f32.mxu0 0.0
    %1261 = vmatmul.mubr.f32.gmra.mrb[0].mxu0 %v1185
    %v1262 = vpop.f32.mrb[0].mxu0
    %v1263 = vadd.f32 %v1170, %v1262
    %v1264 = vpop.f32.mrb[0].mxu0
    %1265 = vmatprep.mubr.f32.mxu0 0.0
    %1266 = vmatmul.mubr.f32.gmra.mrb[0].mxu0 %v1187
    %v1267 = vpop.f32.mrb[0].mxu0
    %v1268 = vadd.f32 %v1175, %v1267
    %v1269 = vpop.f32.mrb[0].mxu0
    %1270 = vmatprep.mubr.f32.mxu0 0.0
    %1271 = vmatmul.mubr.f32.gmra.mrb[0].mxu0 %v1189
    %v1272 = vpop.f32.mrb[0].mxu0
    %v1273 = vadd.f32 %v1180, %v1272
    %v1274 = vpop.f32.mrb[0].mxu0
    %1275 = vdwg.mxu0
    %v1276 = vlaneseq
    %v1277 = vshrl.u32 %v1276, 7
    %v1278 = vsub.s32 7, %v1277
    %v1279 = vrot.slane %v54, %v1278
    %v1280 = vmul.f32 %v977, %v1279
    %v1281 = vmul.f32 %v980, %v1279
    %v1282 = vmul.f32 %v983, %v1279
    %v1283 = vmul.f32 %v986, %v1279
    %v1284 = vadd.f32 %v1258, %v1280
    %v1285 = vadd.f32 %v1263, %v1281
    %v1286 = vadd.f32 %v1268, %v1282
    %v1287 = vadd.f32 %v1273, %v1283
    %v1288 = vlaneseq
    %v1289 = vshrl.u32 %v1288, 7
    %v1290 = vsub.s32 0, %v1289
    %v1291 = vrot.slane %v55, %v1290
    %v1292 = vadd.f32 %v1284, %v1291
    %v1293 = vadd.f32 %v1285, %v1291
    %v1294 = vadd.f32 %v1286, %v1291
    %v1295 = vadd.f32 %v1287, %v1291
    %v1296 = vsub.f32 0.0, %v1292
    %v1297 = vsub.f32 0.0, %v1293
    %v1298 = vsub.f32 0.0, %v1294
    %v1299 = vsub.f32 0.0, %v1295
    %v1300 = vmul.f32 %v1296, 1.442695
    %v1301 = vpow.pop %v1300
    %v1302 = vmul.f32 %v1297, 1.442695
    %v1303 = vpow.pop %v1302
    %v1304 = vmul.f32 %v1298, 1.442695
    %v1305 = vpow.pop %v1304
    %v1306 = vmul.f32 %v1299, 1.442695
    %v1307 = vpow.pop %v1306
    %v1308 = vadd.f32 %v1301, 1.0
    %v1309 = vadd.f32 %v1303, 1.0
    %v1310 = vadd.f32 %v1305, 1.0
    %v1311 = vadd.f32 %v1307, 1.0
    %v1312 = vrcp.pop %v1308
    %v1313 = vmul.f32 1.0, %v1312
    %v1314 = vrcp.pop %v1309
    %v1315 = vmul.f32 1.0, %v1314
    %v1316 = vrcp.pop %v1310
    %v1317 = vmul.f32 1.0, %v1316
    %v1318 = vrcp.pop %v1311
    %v1319 = vmul.f32 1.0, %v1318
    %v1320 = vmul.f32 %v1292, %v1313
    %v1321 = vmul.f32 %v1293, %v1315
    %v1322 = vmul.f32 %v1294, %v1317
    %v1323 = vmul.f32 %v1295, %v1319
    %v1324 = vlaneseq
    %v1325 = vshrl.u32 %v1324, 7
    %v1326 = vsub.s32 1, %v1325
    %v1327 = vrot.slane %v55, %v1326
    %1328 = vrot.lane.b32.xlu0 %v46, 64
    %v1329 = vpop.permute.xlu0 %1328
    %1330 = vrot.lane.b32.xlu0 %v47, 64
    %v1331 = vpop.permute.xlu0 %1330
    %v1335 = vsel %vm78, %v1320, 0
    %v1338 = vsel %vm78, %v1321, 0
    %v1341 = vsel %vm78, %v1322, 0
    %v1344 = vsel %vm78, %v1323, 0
    %1346 = vmatprep.subr.mxu0 0.0
    %1347 = vmatpush1.msra.mxu0 %v1329
    %1348 = vmatprep.subr.mxu0 0.0
    %1349 = vmatpush1.msra.mxu0 %v1331
    %1350 = vmatprep.subr.mxu0 0.0
    %1351 = vmatpush1.msra.mxu0 0.0
    %1352 = vmatprep.subr.mxu0 0.0
    %1353 = vmatpush1.msra.mxu0 0.0
    %1354 = vmatprep.subr.mxu0 0.0
    %1355 = vmatpush1.msra.mxu0 0.0
    %1356 = vmatprep.subr.mxu0 0.0
    %1357 = vmatpush1.msra.mxu0 0.0
    %1358 = vmatprep.subr.mxu0 0.0
    %1359 = vmatpush1.msra.mxu0 0.0
    %1360 = vmatprep.subr.mxu0 0.0
    %1361 = vmatpush1.msra.mxu0 0.0
    %1362 = vmatprep.subr.mxu0 0.0
    %1363 = vmatpush1.msra.mxu0 0.0
    %1364 = vmatprep.subr.mxu0 0.0
    %1365 = vmatpush1.msra.mxu0 0.0
    %1366 = vmatprep.subr.mxu0 0.0
    %1367 = vmatpush1.msra.mxu0 0.0
    %1368 = vmatprep.subr.mxu0 0.0
    %1369 = vmatpush1.msra.mxu0 0.0
    %1370 = vmatprep.subr.mxu0 0.0
    %1371 = vmatpush1.msra.mxu0 0.0
    %1372 = vmatprep.subr.mxu0 0.0
    %1373 = vmatpush1.msra.mxu0 0.0
    %1374 = vmatprep.subr.mxu0 0.0
    %1375 = vmatpush1.msra.mxu0 0.0
    %1376 = vmatprep.subr.mxu0 0.0
    %1377 = vmatpush1.msra.mxu0 0.0
    %1378 = vmatprep.subr.mxu0 0.0
    %1379 = vmatpush1.msra.mxu0 0.0
    %1380 = vmatprep.subr.mxu0 0.0
    %1381 = vmatpush1.msra.mxu0 0.0
    %1382 = vmatprep.subr.mxu0 0.0
    %1383 = vmatpush1.msra.mxu0 0.0
    %1384 = vmatprep.subr.mxu0 0.0
    %1385 = vmatpush1.msra.mxu0 0.0
    %1386 = vmatprep.subr.mxu0 0.0
    %1387 = vmatpush1.msra.mxu0 0.0
    %1388 = vmatprep.subr.mxu0 0.0
    %1389 = vmatpush1.msra.mxu0 0.0
    %1390 = vmatprep.subr.mxu0 0.0
    %1391 = vmatpush1.msra.mxu0 0.0
    %1392 = vmatprep.subr.mxu0 0.0
    %1393 = vmatpush1.msra.mxu0 0.0
    %1394 = vmatprep.subr.mxu0 0.0
    %1395 = vmatpush1.msra.mxu0 0.0
    %1396 = vmatprep.subr.mxu0 0.0
    %1397 = vmatpush1.msra.mxu0 0.0
    %1398 = vmatprep.subr.mxu0 0.0
    %1399 = vmatpush1.msra.mxu0 0.0
    %1400 = vmatprep.subr.mxu0 0.0
    %1401 = vmatpush1.msra.mxu0 0.0
    %1402 = vmatprep.subr.mxu0 0.0
    %1403 = vmatpush1.msra.mxu0 0.0
    %1404 = vmatprep.subr.mxu0 0.0
    %1405 = vmatpush1.msra.mxu0 0.0
    %1406 = vmatprep.subr.mxu0 0.0
    %1407 = vmatpush1.msra.mxu0 0.0
    %1408 = vmatprep.subr.mxu0 0.0
    %1409 = vmatpush1.msra.mxu0 0.0
    %1410 = vmatprep.mubr.f32.mxu0 0.0
    %1411 = vmatmul.mubr.f32.gmra.mrb[0].mxu0 %v1335
    %v1412 = vpop.f32.mrb[0].mxu0
    %v1413 = vadd.f32 %v1327, %v1412
    %v1414 = vpop.f32.mrb[0].mxu0
    %1415 = vmatprep.mubr.f32.mxu0 0.0
    %1416 = vmatmul.mubr.f32.gmra.mrb[0].mxu0 %v1338
    %v1417 = vpop.f32.mrb[0].mxu0
    %v1418 = vadd.f32 %v1327, %v1417
    %v1419 = vpop.f32.mrb[0].mxu0
    %1420 = vmatprep.mubr.f32.mxu0 0.0
    %1421 = vmatmul.mubr.f32.gmra.mrb[0].mxu0 %v1341
    %v1422 = vpop.f32.mrb[0].mxu0
    %v1423 = vadd.f32 %v1327, %v1422
    %v1424 = vpop.f32.mrb[0].mxu0
    %1425 = vmatprep.mubr.f32.mxu0 0.0
    %1426 = vmatmul.mubr.f32.gmra.mrb[0].mxu0 %v1344
    %v1427 = vpop.f32.mrb[0].mxu0
    %v1428 = vadd.f32 %v1327, %v1427
    %v1429 = vpop.f32.mrb[0].mxu0
    %1430 = vdwg.mxu0
    %v1431 = vsub.f32 0.0, %v1413
    %v1432 = vsub.f32 0.0, %v1418
    %v1433 = vsub.f32 0.0, %v1423
    %v1434 = vsub.f32 0.0, %v1428
    %v1435 = vmul.f32 %v1431, 1.442695
    %v1436 = vpow.pop %v1435
    %v1437 = vmul.f32 %v1432, 1.442695
    %v1438 = vpow.pop %v1437
    %v1439 = vmul.f32 %v1433, 1.442695
    %v1440 = vpow.pop %v1439
    %v1441 = vmul.f32 %v1434, 1.442695
    %v1442 = vpow.pop %v1441
    %v1443 = vadd.f32 %v1436, 1.0
    %v1444 = vadd.f32 %v1438, 1.0
    %v1445 = vadd.f32 %v1440, 1.0
    %v1446 = vadd.f32 %v1442, 1.0
    %v1447 = vrcp.pop %v1443
    %v1448 = vmul.f32 1.0, %v1447
    %v1449 = vrcp.pop %v1444
    %v1450 = vmul.f32 1.0, %v1449
    %v1451 = vrcp.pop %v1445
    %v1452 = vmul.f32 1.0, %v1451
    %v1453 = vrcp.pop %v1446
    %v1454 = vmul.f32 1.0, %v1453
    %v1455 = vmul.f32 %v1413, %v1448
    %v1456 = vmul.f32 %v1418, %v1450
    %v1457 = vmul.f32 %v1423, %v1452
    %v1458 = vmul.f32 %v1428, %v1454
    %1459 = vmatprep.subr.mxu0 0.0
    %1460 = vmatpush1.msra.mxu0 %v1455
    %1461 = vmatprep.subr.mxu0 0.0
    %1462 = vmatpush1.msra.mxu0 %v1456
    %1463 = vmatprep.subr.mxu0 0.0
    %1464 = vmatpush1.msra.mxu0 %v1457
    %1465 = vmatprep.subr.mxu0 0.0
    %1466 = vmatpush1.msra.mxu0 %v1458
    %1467 = vmatprep.subr.mxu0 0.0
    %1468 = vmatpush1.msra.mxu0 0.0
    %1469 = vmatprep.subr.mxu0 0.0
    %1470 = vmatpush1.msra.mxu0 0.0
    %1471 = vmatprep.subr.mxu0 0.0
    %1472 = vmatpush1.msra.mxu0 0.0
    %1473 = vmatprep.subr.mxu0 0.0
    %1474 = vmatpush1.msra.mxu0 0.0
    %1475 = vmatprep.subr.mxu0 0.0
    %1476 = vmatpush1.msra.mxu0 0.0
    %1477 = vmatprep.subr.mxu0 0.0
    %1478 = vmatpush1.msra.mxu0 0.0
    %1479 = vmatprep.subr.mxu0 0.0
    %1480 = vmatpush1.msra.mxu0 0.0
    %1481 = vmatprep.subr.mxu0 0.0
    %1482 = vmatpush1.msra.mxu0 0.0
    %1483 = vmatprep.subr.mxu0 0.0
    %1484 = vmatpush1.msra.mxu0 0.0
    %1485 = vmatprep.subr.mxu0 0.0
    %1486 = vmatpush1.msra.mxu0 0.0
    %1487 = vmatprep.subr.mxu0 0.0
    %1488 = vmatpush1.msra.mxu0 0.0
    %1489 = vmatprep.subr.mxu0 0.0
    %1490 = vmatpush1.msra.mxu0 0.0
    %1491 = vmatprep.subr.mxu0 0.0
    %1492 = vmatpush1.msra.mxu0 0.0
    %1493 = vmatprep.subr.mxu0 0.0
    %1494 = vmatpush1.msra.mxu0 0.0
    %1495 = vmatprep.subr.mxu0 0.0
    %1496 = vmatpush1.msra.mxu0 0.0
    %1497 = vmatprep.subr.mxu0 0.0
    %1498 = vmatpush1.msra.mxu0 0.0
    %1499 = vmatprep.subr.mxu0 0.0
    %1500 = vmatpush1.msra.mxu0 0.0
    %1501 = vmatprep.subr.mxu0 0.0
    %1502 = vmatpush1.msra.mxu0 0.0
    %1503 = vmatprep.subr.mxu0 0.0
    %1504 = vmatpush1.msra.mxu0 0.0
    %1505 = vmatprep.subr.mxu0 0.0
    %1506 = vmatpush1.msra.mxu0 0.0
    %1507 = vmatprep.subr.mxu0 0.0
    %1508 = vmatpush1.msra.mxu0 0.0
    %1509 = vmatprep.subr.mxu0 0.0
    %1510 = vmatpush1.msra.mxu0 0.0
    %1511 = vmatprep.subr.mxu0 0.0
    %1512 = vmatpush1.msra.mxu0 0.0
    %1513 = vmatprep.subr.mxu0 0.0
    %1514 = vmatpush1.msra.mxu0 0.0
    %1515 = vmatprep.subr.mxu0 0.0
    %1516 = vmatpush1.msra.mxu0 0.0
    %1517 = vmatprep.subr.mxu0 0.0
    %1518 = vmatpush1.msra.mxu0 0.0
    %1519 = vmatprep.subr.mxu0 0.0
    %1520 = vmatpush1.msra.mxu0 0.0
    %1521 = vmatprep.subr.mxu0 0.0
    %1522 = vmatpush1.msra.mxu0 0.0
    %1523 = vmatprep.mubr.f32.mxu0 0.0
    %1524 = vmatmul.mubr.f32.gmra.mrb[0].mxu0 %v611
    %v1525 = vpop.f32.mrb[0].mxu0
    %v1526 = vadd.f32 0.0, %v1525
    %v1527 = vpop.f32.mrb[0].mxu0
    %1528 = vmatprep.mubr.f32.mxu0 0.0
    %1529 = vmatmul.mubr.f32.gmra.mrb[0].mxu0 %v613
    %v1530 = vpop.f32.mrb[0].mxu0
    %v1531 = vadd.f32 0.0, %v1530
    %v1532 = vpop.f32.mrb[0].mxu0
    %1533 = vdwg.mxu0
    %1536 = vrot.lane.b32.xlu0 %v1526, 16
    %v1537 = vpop.permute.xlu0 %1536
    %1538 = vrot.lane.b32.xlu0 %v1531, 16
    %v1539 = vpop.permute.xlu0 %1538
    %v1542 = vsel %vm78, %v878, %v1537
    %v1543 = vsel %vm78, %v883, %v1539
    %v1544 = vlaneseq
    %v1545 = vshrl.u32 %v1544, 7
    %v1546 = vsub.s32 2, %v1545
    %v1547 = vrot.slane %v55, %v1546
    %v1549 = vsel %vm529, %v1542, 0
    %v1552 = vsel %vm529, %v1543, 0
    %1554 = vmatprep.subr.mxu0 0.0
    %1555 = vmatpush1.msra.mxu0 %v50
    %1556 = vmatprep.subr.mxu0 0.0
    %1557 = vmatpush1.msra.mxu0 %v51
    %1558 = vmatprep.subr.mxu0 0.0
    %1559 = vmatpush1.msra.mxu0 %v52
    %1560 = vmatprep.subr.mxu0 0.0
    %1561 = vmatpush1.msra.mxu0 %v53
    %1562 = vmatprep.subr.mxu0 0.0
    %1563 = vmatpush1.msra.mxu0 0.0
    %1564 = vmatprep.subr.mxu0 0.0
    %1565 = vmatpush1.msra.mxu0 0.0
    %1566 = vmatprep.subr.mxu0 0.0
    %1567 = vmatpush1.msra.mxu0 0.0
    %1568 = vmatprep.subr.mxu0 0.0
    %1569 = vmatpush1.msra.mxu0 0.0
    %1570 = vmatprep.subr.mxu0 0.0
    %1571 = vmatpush1.msra.mxu0 0.0
    %1572 = vmatprep.subr.mxu0 0.0
    %1573 = vmatpush1.msra.mxu0 0.0
    %1574 = vmatprep.subr.mxu0 0.0
    %1575 = vmatpush1.msra.mxu0 0.0
    %1576 = vmatprep.subr.mxu0 0.0
    %1577 = vmatpush1.msra.mxu0 0.0
    %1578 = vmatprep.subr.mxu0 0.0
    %1579 = vmatpush1.msra.mxu0 0.0
    %1580 = vmatprep.subr.mxu0 0.0
    %1581 = vmatpush1.msra.mxu0 0.0
    %1582 = vmatprep.subr.mxu0 0.0
    %1583 = vmatpush1.msra.mxu0 0.0
    %1584 = vmatprep.subr.mxu0 0.0
    %1585 = vmatpush1.msra.mxu0 0.0
    %1586 = vmatprep.subr.mxu0 0.0
    %1587 = vmatpush1.msra.mxu0 0.0
    %1588 = vmatprep.subr.mxu0 0.0
    %1589 = vmatpush1.msra.mxu0 0.0
    %1590 = vmatprep.subr.mxu0 0.0
    %1591 = vmatpush1.msra.mxu0 0.0
    %1592 = vmatprep.subr.mxu0 0.0
    %1593 = vmatpush1.msra.mxu0 0.0
    %1594 = vmatprep.subr.mxu0 0.0
    %1595 = vmatpush1.msra.mxu0 0.0
    %1596 = vmatprep.subr.mxu0 0.0
    %1597 = vmatpush1.msra.mxu0 0.0
    %1598 = vmatprep.subr.mxu0 0.0
    %1599 = vmatpush1.msra.mxu0 0.0
    %1600 = vmatprep.subr.mxu0 0.0
    %1601 = vmatpush1.msra.mxu0 0.0
    %1602 = vmatprep.subr.mxu0 0.0
    %1603 = vmatpush1.msra.mxu0 0.0
    %1604 = vmatprep.subr.mxu0 0.0
    %1605 = vmatpush1.msra.mxu0 0.0
    %1606 = vmatprep.subr.mxu0 0.0
    %1607 = vmatpush1.msra.mxu0 0.0
    %1608 = vmatprep.subr.mxu0 0.0
    %1609 = vmatpush1.msra.mxu0 0.0
    %1610 = vmatprep.subr.mxu0 0.0
    %1611 = vmatpush1.msra.mxu0 0.0
    %1612 = vmatprep.subr.mxu0 0.0
    %1613 = vmatpush1.msra.mxu0 0.0
    %1614 = vmatprep.subr.mxu0 0.0
    %1615 = vmatpush1.msra.mxu0 0.0
    %1616 = vmatprep.subr.mxu0 0.0
    %1617 = vmatpush1.msra.mxu0 0.0
    %1618 = vmatprep.mubr.f32.mxu0 0.0
    %1619 = vmatmul.mubr.f32.gmra.mrb[0].mxu0 %v1549
    %v1620 = vpop.f32.mrb[0].mxu0
    %v1621 = vadd.f32 %v1547, %v1620
    %v1622 = vpop.f32.mrb[0].mxu0
    %1623 = vmatprep.mubr.f32.mxu0 0.0
    %1624 = vmatmul.mubr.f32.gmra.mrb[0].mxu0 %v1552
    %v1625 = vpop.f32.mrb[0].mxu0
    %v1626 = vadd.f32 %v1547, %v1625
    %v1627 = vpop.f32.mrb[0].mxu0
    %1628 = vdwg.mxu0
    %v1629 = vsub.f32 0.0, %v1621
    %v1630 = vsub.f32 0.0, %v1626
    %v1631 = vmul.f32 %v1629, 1.442695
    %v1632 = vpow.pop %v1631
    %v1633 = vmul.f32 %v1630, 1.442695
    %v1634 = vpow.pop %v1633
    %v1635 = vadd.f32 %v1632, 1.0
    %v1636 = vadd.f32 %v1634, 1.0
    %v1637 = vrcp.pop %v1635
    %v1638 = vmul.f32 1.0, %v1637
    %v1639 = vrcp.pop %v1636
    %v1640 = vmul.f32 1.0, %v1639
    %v1641 = vmul.f32 %v1621, %v1638
    %v1642 = vmul.f32 %v1626, %v1640
    %1643 = vrot.lane.b32.xlu0 %v46, 48
    %v1644 = vpop.permute.xlu0 %1643
    %1645 = vrot.lane.b32.xlu0 %v47, 48
    %v1646 = vpop.permute.xlu0 %1645
    %v1650 = vsel %vm78, %v1641, 0
    %v1653 = vsel %vm78, %v1642, 0
    %1655 = vmatprep.subr.mxu0 0.0
    %1656 = vmatpush1.msra.mxu0 %v1644
    %1657 = vmatprep.subr.mxu0 0.0
    %1658 = vmatpush1.msra.mxu0 %v1646
    %1659 = vmatprep.subr.mxu0 0.0
    %1660 = vmatpush1.msra.mxu0 0.0
    %1661 = vmatprep.subr.mxu0 0.0
    %1662 = vmatpush1.msra.mxu0 0.0
    %1663 = vmatprep.subr.mxu0 0.0
    %1664 = vmatpush1.msra.mxu0 0.0
    %1665 = vmatprep.subr.mxu0 0.0
    %1666 = vmatpush1.msra.mxu0 0.0
    %1667 = vmatprep.subr.mxu0 0.0
    %1668 = vmatpush1.msra.mxu0 0.0
    %1669 = vmatprep.subr.mxu0 0.0
    %1670 = vmatpush1.msra.mxu0 0.0
    %1671 = vmatprep.subr.mxu0 0.0
    %1672 = vmatpush1.msra.mxu0 0.0
    %1673 = vmatprep.subr.mxu0 0.0
    %1674 = vmatpush1.msra.mxu0 0.0
    %1675 = vmatprep.subr.mxu0 0.0
    %1676 = vmatpush1.msra.mxu0 0.0
    %1677 = vmatprep.subr.mxu0 0.0
    %1678 = vmatpush1.msra.mxu0 0.0
    %1679 = vmatprep.subr.mxu0 0.0
    %1680 = vmatpush1.msra.mxu0 0.0
    %1681 = vmatprep.subr.mxu0 0.0
    %1682 = vmatpush1.msra.mxu0 0.0
    %1683 = vmatprep.subr.mxu0 0.0
    %1684 = vmatpush1.msra.mxu0 0.0
    %1685 = vmatprep.subr.mxu0 0.0
    %1686 = vmatpush1.msra.mxu0 0.0
    %1687 = vmatprep.subr.mxu0 0.0
    %1688 = vmatpush1.msra.mxu0 0.0
    %1689 = vmatprep.subr.mxu0 0.0
    %1690 = vmatpush1.msra.mxu0 0.0
    %1691 = vmatprep.subr.mxu0 0.0
    %1692 = vmatpush1.msra.mxu0 0.0
    %1693 = vmatprep.subr.mxu0 0.0
    %1694 = vmatpush1.msra.mxu0 0.0
    %1695 = vmatprep.subr.mxu0 0.0
    %1696 = vmatpush1.msra.mxu0 0.0
    %1697 = vmatprep.subr.mxu0 0.0
    %1698 = vmatpush1.msra.mxu0 0.0
    %1699 = vmatprep.subr.mxu0 0.0
    %1700 = vmatpush1.msra.mxu0 0.0
    %1701 = vmatprep.subr.mxu0 0.0
    %1702 = vmatpush1.msra.mxu0 0.0
    %1703 = vmatprep.subr.mxu0 0.0
    %1704 = vmatpush1.msra.mxu0 0.0
    %1705 = vmatprep.subr.mxu0 0.0
    %1706 = vmatpush1.msra.mxu0 0.0
    %1707 = vmatprep.subr.mxu0 0.0
    %1708 = vmatpush1.msra.mxu0 0.0
    %1709 = vmatprep.subr.mxu0 0.0
    %1710 = vmatpush1.msra.mxu0 0.0
    %1711 = vmatprep.subr.mxu0 0.0
    %1712 = vmatpush1.msra.mxu0 0.0
    %1713 = vmatprep.subr.mxu0 0.0
    %1714 = vmatpush1.msra.mxu0 0.0
    %1715 = vmatprep.subr.mxu0 0.0
    %1716 = vmatpush1.msra.mxu0 0.0
    %1717 = vmatprep.subr.mxu0 0.0
    %1718 = vmatpush1.msra.mxu0 0.0
    %1719 = vmatprep.mubr.f32.mxu0 0.0
    %1720 = vmatmul.mubr.f32.gmra.mrb[0].mxu0 %v1650
    %v1721 = vpop.f32.mrb[0].mxu0
    %v1722 = vadd.f32 0.0, %v1721
    %v1723 = vpop.f32.mrb[0].mxu0
    %1724 = vmatprep.mubr.f32.mxu0 0.0
    %1725 = vmatmul.mubr.f32.gmra.mrb[0].mxu0 %v1653
    %v1726 = vpop.f32.mrb[0].mxu0
    %v1727 = vadd.f32 0.0, %v1726
    %v1728 = vpop.f32.mrb[0].mxu0
    %1729 = vdwg.mxu0
    %v1730 = vadd.f32 %v878, %v1722
    %v1731 = vadd.f32 %v883, %v1727
    %v1732 = vlaneseq
    %v1733 = vshrl.u32 %v1732, 7
    %v1734 = vsub.s32 3, %v1733
    %v1735 = vrot.slane %v55, %v1734
    %v1736 = vadd.f32 %v1730, %v1735
    %v1737 = vadd.f32 %v1731, %v1735
    %1738 = vrot.lane.b32.xlu0 %v61, 64
    %v1739 = vpop.permute.xlu0 %1738
    %1740 = vrot.lane.b32.xlu0 %v62, 64
    %v1741 = vpop.permute.xlu0 %1740
    %v1742 = vsel %vm78, %v1739, 0
    %v1744 = vsel %vm78, %v1741, 0
    %1746 = vmatprep.subr.mxu0 0.0
    %1747 = vmatpush1.msra.mxu0 %v1736
    %1748 = vmatprep.subr.mxu0 0.0
    %1749 = vmatpush1.msra.mxu0 %v1737
    %1750 = vmatprep.subr.mxu0 0.0
    %1751 = vmatpush1.msra.mxu0 0.0
    %1752 = vmatprep.subr.mxu0 0.0
    %1753 = vmatpush1.msra.mxu0 0.0
    %1754 = vmatprep.subr.mxu0 0.0
    %1755 = vmatpush1.msra.mxu0 0.0
    %1756 = vmatprep.subr.mxu0 0.0
    %1757 = vmatpush1.msra.mxu0 0.0
    %1758 = vmatprep.subr.mxu0 0.0
    %1759 = vmatpush1.msra.mxu0 0.0
    %1760 = vmatprep.subr.mxu0 0.0
    %1761 = vmatpush1.msra.mxu0 0.0
    %1762 = vmatprep.subr.mxu0 0.0
    %1763 = vmatpush1.msra.mxu0 0.0
    %1764 = vmatprep.subr.mxu0 0.0
    %1765 = vmatpush1.msra.mxu0 0.0
    %1766 = vmatprep.subr.mxu0 0.0
    %1767 = vmatpush1.msra.mxu0 0.0
    %1768 = vmatprep.subr.mxu0 0.0
    %1769 = vmatpush1.msra.mxu0 0.0
    %1770 = vmatprep.subr.mxu0 0.0
    %1771 = vmatpush1.msra.mxu0 0.0
    %1772 = vmatprep.subr.mxu0 0.0
    %1773 = vmatpush1.msra.mxu0 0.0
    %1774 = vmatprep.subr.mxu0 0.0
    %1775 = vmatpush1.msra.mxu0 0.0
    %1776 = vmatprep.subr.mxu0 0.0
    %1777 = vmatpush1.msra.mxu0 0.0
    %1778 = vmatprep.subr.mxu0 0.0
    %1779 = vmatpush1.msra.mxu0 0.0
    %1780 = vmatprep.subr.mxu0 0.0
    %1781 = vmatpush1.msra.mxu0 0.0
    %1782 = vmatprep.subr.mxu0 0.0
    %1783 = vmatpush1.msra.mxu0 0.0
    %1784 = vmatprep.subr.mxu0 0.0
    %1785 = vmatpush1.msra.mxu0 0.0
    %1786 = vmatprep.subr.mxu0 0.0
    %1787 = vmatpush1.msra.mxu0 0.0
    %1788 = vmatprep.subr.mxu0 0.0
    %1789 = vmatpush1.msra.mxu0 0.0
    %1790 = vmatprep.subr.mxu0 0.0
    %1791 = vmatpush1.msra.mxu0 0.0
    %1792 = vmatprep.subr.mxu0 0.0
    %1793 = vmatpush1.msra.mxu0 0.0
    %1794 = vmatprep.subr.mxu0 0.0
    %1795 = vmatpush1.msra.mxu0 0.0
    %1796 = vmatprep.subr.mxu0 0.0
    %1797 = vmatpush1.msra.mxu0 0.0
    %1798 = vmatprep.subr.mxu0 0.0
    %1799 = vmatpush1.msra.mxu0 0.0
    %1800 = vmatprep.subr.mxu0 0.0
    %1801 = vmatpush1.msra.mxu0 0.0
    %1802 = vmatprep.subr.mxu0 0.0
    %1803 = vmatpush1.msra.mxu0 0.0
    %1804 = vmatprep.subr.mxu0 0.0
    %1805 = vmatpush1.msra.mxu0 0.0
    %1806 = vmatprep.subr.mxu0 0.0
    %1807 = vmatpush1.msra.mxu0 0.0
    %1808 = vmatprep.subr.mxu0 0.0
    %1809 = vmatpush1.msra.mxu0 0.0
    %1810 = vmatprep.mubr.f32.mxu0 0.0
    %1811 = vmatmul.mubr.f32.gmra.mrb[0].mxu0 %v1742
    %v1812 = vpop.f32.mrb[0].mxu0
    %v1813 = vadd.f32 0.0, %v1812
    %v1814 = vpop.f32.mrb[0].mxu0
    %1815 = vmatprep.mubr.f32.mxu0 0.0
    %1816 = vmatmul.mubr.f32.gmra.mrb[0].mxu0 %v1744
    %v1817 = vpop.f32.mrb[0].mxu0
    %v1818 = vadd.f32 0.0, %v1817
    %v1819 = vpop.f32.mrb[0].mxu0
    %1820 = vdwg.mxu0
    %v1821 = vlaneseq
    %v1822 = vshrl.u32 %v1821, 7
    %v1823 = vsub.s32 4, %v1822
    %v1824 = vrot.slane %v55, %v1823
    %v1826 = vsel %vm78, %v1813, 0
    %v1829 = vsel %vm78, %v1818, 0
    %1831 = vmatprep.subr.mxu0 0.0
    %1832 = vmatpush1.msra.mxu0 %v48
    %1833 = vmatprep.subr.mxu0 0.0
    %1834 = vmatpush1.msra.mxu0 %v49
    %1835 = vmatprep.subr.mxu0 0.0
    %1836 = vmatpush1.msra.mxu0 0.0
    %1837 = vmatprep.subr.mxu0 0.0
    %1838 = vmatpush1.msra.mxu0 0.0
    %1839 = vmatprep.subr.mxu0 0.0
    %1840 = vmatpush1.msra.mxu0 0.0
    %1841 = vmatprep.subr.mxu0 0.0
    %1842 = vmatpush1.msra.mxu0 0.0
    %1843 = vmatprep.subr.mxu0 0.0
    %1844 = vmatpush1.msra.mxu0 0.0
    %1845 = vmatprep.subr.mxu0 0.0
    %1846 = vmatpush1.msra.mxu0 0.0
    %1847 = vmatprep.subr.mxu0 0.0
    %1848 = vmatpush1.msra.mxu0 0.0
    %1849 = vmatprep.subr.mxu0 0.0
    %1850 = vmatpush1.msra.mxu0 0.0
    %1851 = vmatprep.subr.mxu0 0.0
    %1852 = vmatpush1.msra.mxu0 0.0
    %1853 = vmatprep.subr.mxu0 0.0
    %1854 = vmatpush1.msra.mxu0 0.0
    %1855 = vmatprep.subr.mxu0 0.0
    %1856 = vmatpush1.msra.mxu0 0.0
    %1857 = vmatprep.subr.mxu0 0.0
    %1858 = vmatpush1.msra.mxu0 0.0
    %1859 = vmatprep.subr.mxu0 0.0
    %1860 = vmatpush1.msra.mxu0 0.0
    %1861 = vmatprep.subr.mxu0 0.0
    %1862 = vmatpush1.msra.mxu0 0.0
    %1863 = vmatprep.subr.mxu0 0.0
    %1864 = vmatpush1.msra.mxu0 0.0
    %1865 = vmatprep.subr.mxu0 0.0
    %1866 = vmatpush1.msra.mxu0 0.0
    %1867 = vmatprep.subr.mxu0 0.0
    %1868 = vmatpush1.msra.mxu0 0.0
    %1869 = vmatprep.subr.mxu0 0.0
    %1870 = vmatpush1.msra.mxu0 0.0
    %1871 = vmatprep.subr.mxu0 0.0
    %1872 = vmatpush1.msra.mxu0 0.0
    %1873 = vmatprep.subr.mxu0 0.0
    %1874 = vmatpush1.msra.mxu0 0.0
    %1875 = vmatprep.subr.mxu0 0.0
    %1876 = vmatpush1.msra.mxu0 0.0
    %1877 = vmatprep.subr.mxu0 0.0
    %1878 = vmatpush1.msra.mxu0 0.0
    %1879 = vmatprep.subr.mxu0 0.0
    %1880 = vmatpush1.msra.mxu0 0.0
    %1881 = vmatprep.subr.mxu0 0.0
    %1882 = vmatpush1.msra.mxu0 0.0
    %1883 = vmatprep.subr.mxu0 0.0
    %1884 = vmatpush1.msra.mxu0 0.0
    %1885 = vmatprep.subr.mxu0 0.0
    %1886 = vmatpush1.msra.mxu0 0.0
    %1887 = vmatprep.subr.mxu0 0.0
    %1888 = vmatpush1.msra.mxu0 0.0
    %1889 = vmatprep.subr.mxu0 0.0
    %1890 = vmatpush1.msra.mxu0 0.0
    %1891 = vmatprep.subr.mxu0 0.0
    %1892 = vmatpush1.msra.mxu0 0.0
    %1893 = vmatprep.subr.mxu0 0.0
    %1894 = vmatpush1.msra.mxu0 0.0
    %1895 = vmatprep.mubr.f32.mxu0 0.0
    %1896 = vmatmul.mubr.f32.gmra.mrb[0].mxu0 %v1826
    %v1897 = vpop.f32.mrb[0].mxu0
    %v1898 = vadd.f32 %v1824, %v1897
    %v1899 = vpop.f32.mrb[0].mxu0
    %1900 = vmatprep.mubr.f32.mxu0 0.0
    %1901 = vmatmul.mubr.f32.gmra.mrb[0].mxu0 %v1829
    %v1902 = vpop.f32.mrb[0].mxu0
    %v1903 = vadd.f32 %v1824, %v1902
    %v1904 = vpop.f32.mrb[0].mxu0
    %1905 = vdwg.mxu0
    %v1906 = vmax.f32 %v1898, 0.0
    %v1907 = vmax.f32 %v1903, 0.0
    %v1908 = vlaneseq
    %v1909 = vshrl.u32 %v1908, 7
    %v1910 = vsub.s32 5, %v1909
    %v1911 = vrot.slane %v55, %v1910
    %1914 = vrot.lane.b32.xlu0 %v48, 112
    %v1915 = vpop.permute.xlu0 %1914
    %1916 = vrot.lane.b32.xlu0 %v49, 112
    %v1917 = vpop.permute.xlu0 %1916
    %v1921 = vsel %vm78, %v1906, 0
    %v1924 = vsel %vm78, %v1907, 0
    %1926 = vmatprep.subr.mxu0 0.0
    %1927 = vmatpush1.msra.mxu0 %v1915
    %1928 = vmatprep.subr.mxu0 0.0
    %1929 = vmatpush1.msra.mxu0 %v1917
    %1930 = vmatprep.subr.mxu0 0.0
    %1931 = vmatpush1.msra.mxu0 0.0
    %1932 = vmatprep.subr.mxu0 0.0
    %1933 = vmatpush1.msra.mxu0 0.0
    %1934 = vmatprep.subr.mxu0 0.0
    %1935 = vmatpush1.msra.mxu0 0.0
    %1936 = vmatprep.subr.mxu0 0.0
    %1937 = vmatpush1.msra.mxu0 0.0
    %1938 = vmatprep.subr.mxu0 0.0
    %1939 = vmatpush1.msra.mxu0 0.0
    %1940 = vmatprep.subr.mxu0 0.0
    %1941 = vmatpush1.msra.mxu0 0.0
    %1942 = vmatprep.subr.mxu0 0.0
    %1943 = vmatpush1.msra.mxu0 0.0
    %1944 = vmatprep.subr.mxu0 0.0
    %1945 = vmatpush1.msra.mxu0 0.0
    %1946 = vmatprep.subr.mxu0 0.0
    %1947 = vmatpush1.msra.mxu0 0.0
    %1948 = vmatprep.subr.mxu0 0.0
    %1949 = vmatpush1.msra.mxu0 0.0
    %1950 = vmatprep.subr.mxu0 0.0
    %1951 = vmatpush1.msra.mxu0 0.0
    %1952 = vmatprep.subr.mxu0 0.0
    %1953 = vmatpush1.msra.mxu0 0.0
    %1954 = vmatprep.subr.mxu0 0.0
    %1955 = vmatpush1.msra.mxu0 0.0
    %1956 = vmatprep.subr.mxu0 0.0
    %1957 = vmatpush1.msra.mxu0 0.0
    %1958 = vmatprep.subr.mxu0 0.0
    %1959 = vmatpush1.msra.mxu0 0.0
    %1960 = vmatprep.subr.mxu0 0.0
    %1961 = vmatpush1.msra.mxu0 0.0
    %1962 = vmatprep.subr.mxu0 0.0
    %1963 = vmatpush1.msra.mxu0 0.0
    %1964 = vmatprep.subr.mxu0 0.0
    %1965 = vmatpush1.msra.mxu0 0.0
    %1966 = vmatprep.subr.mxu0 0.0
    %1967 = vmatpush1.msra.mxu0 0.0
    %1968 = vmatprep.subr.mxu0 0.0
    %1969 = vmatpush1.msra.mxu0 0.0
    %1970 = vmatprep.subr.mxu0 0.0
    %1971 = vmatpush1.msra.mxu0 0.0
    %1972 = vmatprep.subr.mxu0 0.0
    %1973 = vmatpush1.msra.mxu0 0.0
    %1974 = vmatprep.subr.mxu0 0.0
    %1975 = vmatpush1.msra.mxu0 0.0
    %1976 = vmatprep.subr.mxu0 0.0
    %1977 = vmatpush1.msra.mxu0 0.0
    %1978 = vmatprep.subr.mxu0 0.0
    %1979 = vmatpush1.msra.mxu0 0.0
    %1980 = vmatprep.subr.mxu0 0.0
    %1981 = vmatpush1.msra.mxu0 0.0
    %1982 = vmatprep.subr.mxu0 0.0
    %1983 = vmatpush1.msra.mxu0 0.0
    %1984 = vmatprep.subr.mxu0 0.0
    %1985 = vmatpush1.msra.mxu0 0.0
    %1986 = vmatprep.subr.mxu0 0.0
    %1987 = vmatpush1.msra.mxu0 0.0
    %1988 = vmatprep.subr.mxu0 0.0
    %1989 = vmatpush1.msra.mxu0 0.0
    %1990 = vmatprep.mubr.f32.mxu0 0.0
    %1991 = vmatmul.mubr.f32.gmra.mrb[0].mxu0 %v1921
    %v1992 = vpop.f32.mrb[0].mxu0
    %v1993 = vadd.f32 %v1911, %v1992
    %v1994 = vpop.f32.mrb[0].mxu0
    %1995 = vmatprep.mubr.f32.mxu0 0.0
    %1996 = vmatmul.mubr.f32.gmra.mrb[0].mxu0 %v1924
    %v1997 = vpop.f32.mrb[0].mxu0
    %v1998 = vadd.f32 %v1911, %v1997
    %v1999 = vpop.f32.mrb[0].mxu0
    %2000 = vdwg.mxu0
    %vm2001 = vcmp.gt.f32.partialorder %v1993, 0.0
    %vm2002 = vcmp.gt.f32.partialorder %v1998, 0.0
    %v2003 = vmin.f32 %v1993, 0.0
    %v2004 = vmin.f32 %v1998, 0.0
    %v2005 = vmul.f32 %v2003, 1.442695
    %v2006 = vpow.pop %v2005
    %v2007 = vmul.f32 %v2004, 1.442695
    %v2008 = vpow.pop %v2007
    %v2009 = vsub.f32 %v2006, 1.0
    %v2010 = vsub.f32 %v2008, 1.0
    %v2011 = vmul.f32 %v2009, 0.1
    %v2012 = vmul.f32 %v2010, 0.1
    %v2013 = vsel %vm2001, %v1993, %v2011
    %v2014 = vsel %vm2002, %v1998, %v2012
    %2015 = vmatprep.subr.mxu0 0.0
    %2016 = vmatpush1.msra.mxu0 %v2013
    %2017 = vmatprep.subr.mxu0 0.0
    %2018 = vmatpush1.msra.mxu0 %v2014
    %2019 = vmatprep.subr.mxu0 0.0
    %2020 = vmatpush1.msra.mxu0 0.0
    %2021 = vmatprep.subr.mxu0 0.0
    %2022 = vmatpush1.msra.mxu0 0.0
    %2023 = vmatprep.subr.mxu0 0.0
    %2024 = vmatpush1.msra.mxu0 0.0
    %2025 = vmatprep.subr.mxu0 0.0
    %2026 = vmatpush1.msra.mxu0 0.0
    %2027 = vmatprep.subr.mxu0 0.0
    %2028 = vmatpush1.msra.mxu0 0.0
    %2029 = vmatprep.subr.mxu0 0.0
    %2030 = vmatpush1.msra.mxu0 0.0
    %2031 = vmatprep.subr.mxu0 0.0
    %2032 = vmatpush1.msra.mxu0 0.0
    %2033 = vmatprep.subr.mxu0 0.0
    %2034 = vmatpush1.msra.mxu0 0.0
    %2035 = vmatprep.subr.mxu0 0.0
    %2036 = vmatpush1.msra.mxu0 0.0
    %2037 = vmatprep.subr.mxu0 0.0
    %2038 = vmatpush1.msra.mxu0 0.0
    %2039 = vmatprep.subr.mxu0 0.0
    %2040 = vmatpush1.msra.mxu0 0.0
    %2041 = vmatprep.subr.mxu0 0.0
    %2042 = vmatpush1.msra.mxu0 0.0
    %2043 = vmatprep.subr.mxu0 0.0
    %2044 = vmatpush1.msra.mxu0 0.0
    %2045 = vmatprep.subr.mxu0 0.0
    %2046 = vmatpush1.msra.mxu0 0.0
    %2047 = vmatprep.subr.mxu0 0.0
    %2048 = vmatpush1.msra.mxu0 0.0
    %2049 = vmatprep.subr.mxu0 0.0
    %2050 = vmatpush1.msra.mxu0 0.0
    %2051 = vmatprep.subr.mxu0 0.0
    %2052 = vmatpush1.msra.mxu0 0.0
    %2053 = vmatprep.subr.mxu0 0.0
    %2054 = vmatpush1.msra.mxu0 0.0
    %2055 = vmatprep.subr.mxu0 0.0
    %2056 = vmatpush1.msra.mxu0 0.0
    %2057 = vmatprep.subr.mxu0 0.0
    %2058 = vmatpush1.msra.mxu0 0.0
    %2059 = vmatprep.subr.mxu0 0.0
    %2060 = vmatpush1.msra.mxu0 0.0
    %2061 = vmatprep.subr.mxu0 0.0
    %2062 = vmatpush1.msra.mxu0 0.0
    %2063 = vmatprep.subr.mxu0 0.0
    %2064 = vmatpush1.msra.mxu0 0.0
    %2065 = vmatprep.subr.mxu0 0.0
    %2066 = vmatpush1.msra.mxu0 0.0
    %2067 = vmatprep.subr.mxu0 0.0
    %2068 = vmatpush1.msra.mxu0 0.0
    %2069 = vmatprep.subr.mxu0 0.0
    %2070 = vmatpush1.msra.mxu0 0.0
    %2071 = vmatprep.subr.mxu0 0.0
    %2072 = vmatpush1.msra.mxu0 0.0
    %2073 = vmatprep.subr.mxu0 0.0
    %2074 = vmatpush1.msra.mxu0 0.0
    %2075 = vmatprep.subr.mxu0 0.0
    %2076 = vmatpush1.msra.mxu0 0.0
    %2077 = vmatprep.subr.mxu0 0.0
    %2078 = vmatpush1.msra.mxu0 0.0
    %2079 = vmatprep.mubr.f32.mxu0 0.0
    %2080 = vmatmul.mubr.f32.gmra.mrb[0].mxu0 %v1742
    %v2081 = vpop.f32.mrb[0].mxu0
    %v2082 = vadd.f32 0.0, %v2081
    %v2083 = vpop.f32.mrb[0].mxu0
    %2084 = vmatprep.mubr.f32.mxu0 0.0
    %2085 = vmatmul.mubr.f32.gmra.mrb[0].mxu0 %v1744
    %v2086 = vpop.f32.mrb[0].mxu0
    %v2087 = vadd.f32 0.0, %v2086
    %v2088 = vpop.f32.mrb[0].mxu0
    %2089 = vdwg.mxu0
    %v2090 = vlaneseq
    %v2091 = vshrl.u32 %v2090, 7
    %v2092 = vsub.s32 6, %v2091
    %v2093 = vrot.slane %v55, %v2092
    %2094 = vrot.lane.b32.xlu0 %v48, 96
    %v2095 = vpop.permute.xlu0 %2094
    %2096 = vrot.lane.b32.xlu0 %v49, 96
    %v2097 = vpop.permute.xlu0 %2096
    %v2101 = vsel %vm78, %v2082, 0
    %v2104 = vsel %vm78, %v2087, 0
    %2106 = vmatprep.subr.mxu0 0.0
    %2107 = vmatpush1.msra.mxu0 %v2095
    %2108 = vmatprep.subr.mxu0 0.0
    %2109 = vmatpush1.msra.mxu0 %v2097
    %2110 = vmatprep.subr.mxu0 0.0
    %2111 = vmatpush1.msra.mxu0 0.0
    %2112 = vmatprep.subr.mxu0 0.0
    %2113 = vmatpush1.msra.mxu0 0.0
    %2114 = vmatprep.subr.mxu0 0.0
    %2115 = vmatpush1.msra.mxu0 0.0
    %2116 = vmatprep.subr.mxu0 0.0
    %2117 = vmatpush1.msra.mxu0 0.0
    %2118 = vmatprep.subr.mxu0 0.0
    %2119 = vmatpush1.msra.mxu0 0.0
    %2120 = vmatprep.subr.mxu0 0.0
    %2121 = vmatpush1.msra.mxu0 0.0
    %2122 = vmatprep.subr.mxu0 0.0
    %2123 = vmatpush1.msra.mxu0 0.0
    %2124 = vmatprep.subr.mxu0 0.0
    %2125 = vmatpush1.msra.mxu0 0.0
    %2126 = vmatprep.subr.mxu0 0.0
    %2127 = vmatpush1.msra.mxu0 0.0
    %2128 = vmatprep.subr.mxu0 0.0
    %2129 = vmatpush1.msra.mxu0 0.0
    %2130 = vmatprep.subr.mxu0 0.0
    %2131 = vmatpush1.msra.mxu0 0.0
    %2132 = vmatprep.subr.mxu0 0.0
    %2133 = vmatpush1.msra.mxu0 0.0
    %2134 = vmatprep.subr.mxu0 0.0
    %2135 = vmatpush1.msra.mxu0 0.0
    %2136 = vmatprep.subr.mxu0 0.0
    %2137 = vmatpush1.msra.mxu0 0.0
    %2138 = vmatprep.subr.mxu0 0.0
    %2139 = vmatpush1.msra.mxu0 0.0
    %2140 = vmatprep.subr.mxu0 0.0
    %2141 = vmatpush1.msra.mxu0 0.0
    %2142 = vmatprep.subr.mxu0 0.0
    %2143 = vmatpush1.msra.mxu0 0.0
    %2144 = vmatprep.subr.mxu0 0.0
    %2145 = vmatpush1.msra.mxu0 0.0
    %2146 = vmatprep.subr.mxu0 0.0
    %2147 = vmatpush1.msra.mxu0 0.0
    %2148 = vmatprep.subr.mxu0 0.0
    %2149 = vmatpush1.msra.mxu0 0.0
    %2150 = vmatprep.subr.mxu0 0.0
    %2151 = vmatpush1.msra.mxu0 0.0
    %2152 = vmatprep.subr.mxu0 0.0
    %2153 = vmatpush1.msra.mxu0 0.0
    %2154 = vmatprep.subr.mxu0 0.0
    %2155 = vmatpush1.msra.mxu0 0.0
    %2156 = vmatprep.subr.mxu0 0.0
    %2157 = vmatpush1.msra.mxu0 0.0
    %2158 = vmatprep.subr.mxu0 0.0
    %2159 = vmatpush1.msra.mxu0 0.0
    %2160 = vmatprep.subr.mxu0 0.0
    %2161 = vmatpush1.msra.mxu0 0.0
    %2162 = vmatprep.subr.mxu0 0.0
    %2163 = vmatpush1.msra.mxu0 0.0
    %2164 = vmatprep.subr.mxu0 0.0
    %2165 = vmatpush1.msra.mxu0 0.0
    %2166 = vmatprep.subr.mxu0 0.0
    %2167 = vmatpush1.msra.mxu0 0.0
    %2168 = vmatprep.subr.mxu0 0.0
    %2169 = vmatpush1.msra.mxu0 0.0
    %2170 = vmatprep.mubr.f32.mxu0 0.0
    %2171 = vmatmul.mubr.f32.gmra.mrb[0].mxu0 %v2101
    %v2172 = vpop.f32.mrb[0].mxu0
    %v2173 = vadd.f32 %v2093, %v2172
    %v2174 = vpop.f32.mrb[0].mxu0
    %2175 = vmatprep.mubr.f32.mxu0 0.0
    %2176 = vmatmul.mubr.f32.gmra.mrb[0].mxu0 %v2104
    %v2177 = vpop.f32.mrb[0].mxu0
    %v2178 = vadd.f32 %v2093, %v2177
    %v2179 = vpop.f32.mrb[0].mxu0
    %2180 = vdwg.mxu0
    %v2181 = vmax.f32 %v2173, 0.0
    %v2182 = vmax.f32 %v2178, 0.0
    %v2183 = vlaneseq
    %v2184 = vshrl.u32 %v2183, 7
    %v2185 = vsub.s32 7, %v2184
    %v2186 = vrot.slane %v55, %v2185
    %2187 = vrot.lane.b32.xlu0 %v48, 80
    %v2188 = vpop.permute.xlu0 %2187
    %2189 = vrot.lane.b32.xlu0 %v49, 80
    %v2190 = vpop.permute.xlu0 %2189
    %v2194 = vsel %vm78, %v2181, 0
    %v2197 = vsel %vm78, %v2182, 0
    %2199 = vmatprep.subr.mxu0 0.0
    %2200 = vmatpush1.msra.mxu0 %v2188
    %2201 = vmatprep.subr.mxu0 0.0
    %2202 = vmatpush1.msra.mxu0 %v2190
    %2203 = vmatprep.subr.mxu0 0.0
    %2204 = vmatpush1.msra.mxu0 0.0
    %2205 = vmatprep.subr.mxu0 0.0
    %2206 = vmatpush1.msra.mxu0 0.0
    %2207 = vmatprep.subr.mxu0 0.0
    %2208 = vmatpush1.msra.mxu0 0.0
    %2209 = vmatprep.subr.mxu0 0.0
    %2210 = vmatpush1.msra.mxu0 0.0
    %2211 = vmatprep.subr.mxu0 0.0
    %2212 = vmatpush1.msra.mxu0 0.0
    %2213 = vmatprep.subr.mxu0 0.0
    %2214 = vmatpush1.msra.mxu0 0.0
    %2215 = vmatprep.subr.mxu0 0.0
    %2216 = vmatpush1.msra.mxu0 0.0
    %2217 = vmatprep.subr.mxu0 0.0
    %2218 = vmatpush1.msra.mxu0 0.0
    %2219 = vmatprep.subr.mxu0 0.0
    %2220 = vmatpush1.msra.mxu0 0.0
    %2221 = vmatprep.subr.mxu0 0.0
    %2222 = vmatpush1.msra.mxu0 0.0
    %2223 = vmatprep.subr.mxu0 0.0
    %2224 = vmatpush1.msra.mxu0 0.0
    %2225 = vmatprep.subr.mxu0 0.0
    %2226 = vmatpush1.msra.mxu0 0.0
    %2227 = vmatprep.subr.mxu0 0.0
    %2228 = vmatpush1.msra.mxu0 0.0
    %2229 = vmatprep.subr.mxu0 0.0
    %2230 = vmatpush1.msra.mxu0 0.0
    %2231 = vmatprep.subr.mxu0 0.0
    %2232 = vmatpush1.msra.mxu0 0.0
    %2233 = vmatprep.subr.mxu0 0.0
    %2234 = vmatpush1.msra.mxu0 0.0
    %2235 = vmatprep.subr.mxu0 0.0
    %2236 = vmatpush1.msra.mxu0 0.0
    %2237 = vmatprep.subr.mxu0 0.0
    %2238 = vmatpush1.msra.mxu0 0.0
    %2239 = vmatprep.subr.mxu0 0.0
    %2240 = vmatpush1.msra.mxu0 0.0
    %2241 = vmatprep.subr.mxu0 0.0
    %2242 = vmatpush1.msra.mxu0 0.0
    %2243 = vmatprep.subr.mxu0 0.0
    %2244 = vmatpush1.msra.mxu0 0.0
    %2245 = vmatprep.subr.mxu0 0.0
    %2246 = vmatpush1.msra.mxu0 0.0
    %2247 = vmatprep.subr.mxu0 0.0
    %2248 = vmatpush1.msra.mxu0 0.0
    %2249 = vmatprep.subr.mxu0 0.0
    %2250 = vmatpush1.msra.mxu0 0.0
    %2251 = vmatprep.subr.mxu0 0.0
    %2252 = vmatpush1.msra.mxu0 0.0
    %2253 = vmatprep.subr.mxu0 0.0
    %2254 = vmatpush1.msra.mxu0 0.0
    %2255 = vmatprep.subr.mxu0 0.0
    %2256 = vmatpush1.msra.mxu0 0.0
    %2257 = vmatprep.subr.mxu0 0.0
    %2258 = vmatpush1.msra.mxu0 0.0
    %2259 = vmatprep.subr.mxu0 0.0
    %2260 = vmatpush1.msra.mxu0 0.0
    %2261 = vmatprep.subr.mxu0 0.0
    %2262 = vmatpush1.msra.mxu0 0.0
    %2263 = vmatprep.mubr.f32.mxu0 0.0
    %2264 = vmatmul.mubr.f32.gmra.mrb[0].mxu0 %v2194
    %v2265 = vpop.f32.mrb[0].mxu0
    %v2266 = vadd.f32 %v2186, %v2265
    %v2267 = vpop.f32.mrb[0].mxu0
    %2268 = vmatprep.mubr.f32.mxu0 0.0
    %2269 = vmatmul.mubr.f32.gmra.mrb[0].mxu0 %v2197
    %v2270 = vpop.f32.mrb[0].mxu0
    %v2271 = vadd.f32 %v2186, %v2270
    %v2272 = vpop.f32.mrb[0].mxu0
    %2273 = vdwg.mxu0
    %vm2274 = vcmp.gt.f32.partialorder %v2266, 0.0
    %vm2275 = vcmp.gt.f32.partialorder %v2271, 0.0
    %v2276 = vmin.f32 %v2266, 0.0
    %v2277 = vmin.f32 %v2271, 0.0
    %v2278 = vmul.f32 %v2276, 1.442695
    %v2279 = vpow.pop %v2278
    %v2280 = vmul.f32 %v2277, 1.442695
    %v2281 = vpow.pop %v2280
    %v2282 = vsub.f32 %v2279, 1.0
    %v2283 = vsub.f32 %v2281, 1.0
    %v2284 = vmul.f32 %v2282, 0.1
    %v2285 = vmul.f32 %v2283, 0.1
    %v2286 = vsel %vm2274, %v2266, %v2284
    %v2287 = vsel %vm2275, %v2271, %v2285
    %v2288 = vsel %vm78, %v2286, 0.0
    %v2289 = vrot.slane %v2288, 4
    %v2290 = vadd.f32 %v2288, %v2289
    %v2291 = vrot.slane %v2290, 2
    %v2292 = vadd.f32 %v2290, %v2291
    %v2293 = vrot.slane %v2292, 1
    %v2294 = vadd.f32 %v2292, %v2293
    %v2295 = vmul.f32 %v2294, 0.125
    %v2296 = vsel %vm78, %v2286, -inf
    %v2297 = vrot.slane %v2296, 4
    %v2298 = vmax.f32 %v2296, %v2297
    %v2299 = vrot.slane %v2298, 2
    %v2300 = vmax.f32 %v2298, %v2299
    %v2301 = vrot.slane %v2300, 1
    %v2302 = vmax.f32 %v2300, %v2301
    %v2303 = vsel %vm78, %v2287, 0.0
    %v2304 = vrot.slane %v2303, 4
    %v2305 = vadd.f32 %v2303, %v2304
    %v2306 = vrot.slane %v2305, 2
    %v2307 = vadd.f32 %v2305, %v2306
    %v2308 = vrot.slane %v2307, 1
    %v2309 = vadd.f32 %v2307, %v2308
    %v2310 = vmul.f32 %v2309, 0.125
    %v2311 = vsel %vm78, %v2287, -inf
    %v2312 = vrot.slane %v2311, 4
    %v2313 = vmax.f32 %v2311, %v2312
    %v2314 = vrot.slane %v2313, 2
    %v2315 = vmax.f32 %v2313, %v2314
    %v2316 = vrot.slane %v2315, 1
    %v2317 = vmax.f32 %v2315, %v2316
    %vm2318 = vcmask 1040384
    %v2319 = vsel %vm2318, %v2295, %v2310
    %v2320 = vsel %vm2318, %v2302, %v2317
    %2322 = vrot.lane.b32.xlu0 %v2320, 16
    %v2323 = vpop.permute.xlu0 %2322
    %v2325 = vsel %vm78, %v2319, %v2323
    %2327 = vset.pattern.permute.xlu0 0
    %2328 = vperm.xlu0 %2327, %v65
    %v2329 = vpop.permute.xlu0 %2328
    %v2331 = vlaneseq
    %v2332 = vshrl.u32 %v2331, 7
    %v2333 = vsub.s32 0, %v2332
    %v2334 = vrot.slane %v56, %v2333
    %v2335 = vmul.f32 %v2329, %v2334
    %2340 = vrot.lane.b32.xlu0 %v50, 112
    %v2341 = vpop.permute.xlu0 %2340
    %2342 = vrot.lane.b32.xlu0 %v51, 112
    %v2343 = vpop.permute.xlu0 %2342
    %2344 = vrot.lane.b32.xlu0 %v52, 112
    %v2345 = vpop.permute.xlu0 %2344
    %2346 = vrot.lane.b32.xlu0 %v53, 112
    %v2347 = vpop.permute.xlu0 %2346
    %v2353 = vsel %vm529, %v2325, 0
    %2355 = vmatprep.subr.mxu0 0.0
    %2356 = vmatpush1.msra.mxu0 %v2341
    %2357 = vmatprep.subr.mxu0 0.0
    %2358 = vmatpush1.msra.mxu0 %v2343
    %2359 = vmatprep.subr.mxu0 0.0
    %2360 = vmatpush1.msra.mxu0 %v2345
    %2361 = vmatprep.subr.mxu0 0.0
    %2362 = vmatpush1.msra.mxu0 %v2347
    %2363 = vmatprep.subr.mxu0 0.0
    %2364 = vmatpush1.msra.mxu0 0.0
    %2365 = vmatprep.subr.mxu0 0.0
    %2366 = vmatpush1.msra.mxu0 0.0
    %2367 = vmatprep.subr.mxu0 0.0
    %2368 = vmatpush1.msra.mxu0 0.0
    %2369 = vmatprep.subr.mxu0 0.0
    %2370 = vmatpush1.msra.mxu0 0.0
    %2371 = vmatprep.subr.mxu0 0.0
    %2372 = vmatpush1.msra.mxu0 0.0
    %2373 = vmatprep.subr.mxu0 0.0
    %2374 = vmatpush1.msra.mxu0 0.0
    %2375 = vmatprep.subr.mxu0 0.0
    %2376 = vmatpush1.msra.mxu0 0.0
    %2377 = vmatprep.subr.mxu0 0.0
    %2378 = vmatpush1.msra.mxu0 0.0
    %2379 = vmatprep.subr.mxu0 0.0
    %2380 = vmatpush1.msra.mxu0 0.0
    %2381 = vmatprep.subr.mxu0 0.0
    %2382 = vmatpush1.msra.mxu0 0.0
    %2383 = vmatprep.subr.mxu0 0.0
    %2384 = vmatpush1.msra.mxu0 0.0
    %2385 = vmatprep.subr.mxu0 0.0
    %2386 = vmatpush1.msra.mxu0 0.0
    %2387 = vmatprep.subr.mxu0 0.0
    %2388 = vmatpush1.msra.mxu0 0.0
    %2389 = vmatprep.subr.mxu0 0.0
    %2390 = vmatpush1.msra.mxu0 0.0
    %2391 = vmatprep.subr.mxu0 0.0
    %2392 = vmatpush1.msra.mxu0 0.0
    %2393 = vmatprep.subr.mxu0 0.0
    %2394 = vmatpush1.msra.mxu0 0.0
    %2395 = vmatprep.subr.mxu0 0.0
    %2396 = vmatpush1.msra.mxu0 0.0
    %2397 = vmatprep.subr.mxu0 0.0
    %2398 = vmatpush1.msra.mxu0 0.0
    %2399 = vmatprep.subr.mxu0 0.0
    %2400 = vmatpush1.msra.mxu0 0.0
    %2401 = vmatprep.subr.mxu0 0.0
    %2402 = vmatpush1.msra.mxu0 0.0
    %2403 = vmatprep.subr.mxu0 0.0
    %2404 = vmatpush1.msra.mxu0 0.0
    %2405 = vmatprep.subr.mxu0 0.0
    %2406 = vmatpush1.msra.mxu0 0.0
    %2407 = vmatprep.subr.mxu0 0.0
    %2408 = vmatpush1.msra.mxu0 0.0
    %2409 = vmatprep.subr.mxu0 0.0
    %2410 = vmatpush1.msra.mxu0 0.0
    %2411 = vmatprep.subr.mxu0 0.0
    %2412 = vmatpush1.msra.mxu0 0.0
    %2413 = vmatprep.subr.mxu0 0.0
    %2414 = vmatpush1.msra.mxu0 0.0
    %2415 = vmatprep.subr.mxu0 0.0
    %2416 = vmatpush1.msra.mxu0 0.0
    %2417 = vmatprep.subr.mxu0 0.0
    %2418 = vmatpush1.msra.mxu0 0.0
    %2419 = vmatprep.mubr.f32.mxu0 0.0
    %2420 = vmatmul.mubr.f32.gmra.mrb[0].mxu0 %v2353
    %v2421 = vpop.f32.mrb[0].mxu0
    %v2422 = vadd.f32 %v2335, %v2421
    %v2423 = vpop.f32.mrb[0].mxu0
    %2424 = vdwg.mxu0
    %v2425 = vlaneseq
    %v2426 = vshrl.u32 %v2425, 7
    %v2427 = vsub.s32 1, %v2426
    %v2428 = vrot.slane %v56, %v2427
    %v2429 = vadd.f32 %v2422, %v2428
    %vm2430 = vcmp.gt.f32.partialorder %v2429, 0.0
    %v2431 = vmin.f32 %v2429, 0.0
    %v2432 = vmul.f32 %v2431, 1.442695
    %v2433 = vpow.pop %v2432
    %v2434 = vsub.f32 %v2433, 1.0
    %v2435 = vmul.f32 %v2434, 0.1
    %v2436 = vsel %vm2430, %v2429, %v2435
    %v2437 = vlaneseq
    %v2438 = vshrl.u32 %v2437, 7
    %v2439 = vsub.s32 2, %v2438
    %v2440 = vrot.slane %v56, %v2439
    %2441 = vrot.lane.b32.xlu0 %v48, 64
    %v2442 = vpop.permute.xlu0 %2441
    %2443 = vrot.lane.b32.xlu0 %v49, 64
    %v2444 = vpop.permute.xlu0 %2443
    %v2448 = vsel %vm78, %v2436, 0
    %2450 = vmatprep.subr.mxu0 0.0
    %2451 = vmatpush1.msra.mxu0 %v2442
    %2452 = vmatprep.subr.mxu0 0.0
    %2453 = vmatpush1.msra.mxu0 %v2444
    %2454 = vmatprep.subr.mxu0 0.0
    %2455 = vmatpush1.msra.mxu0 0.0
    %2456 = vmatprep.subr.mxu0 0.0
    %2457 = vmatpush1.msra.mxu0 0.0
    %2458 = vmatprep.subr.mxu0 0.0
    %2459 = vmatpush1.msra.mxu0 0.0
    %2460 = vmatprep.subr.mxu0 0.0
    %2461 = vmatpush1.msra.mxu0 0.0
    %2462 = vmatprep.subr.mxu0 0.0
    %2463 = vmatpush1.msra.mxu0 0.0
    %2464 = vmatprep.subr.mxu0 0.0
    %2465 = vmatpush1.msra.mxu0 0.0
    %2466 = vmatprep.subr.mxu0 0.0
    %2467 = vmatpush1.msra.mxu0 0.0
    %2468 = vmatprep.subr.mxu0 0.0
    %2469 = vmatpush1.msra.mxu0 0.0
    %2470 = vmatprep.subr.mxu0 0.0
    %2471 = vmatpush1.msra.mxu0 0.0
    %2472 = vmatprep.subr.mxu0 0.0
    %2473 = vmatpush1.msra.mxu0 0.0
    %2474 = vmatprep.subr.mxu0 0.0
    %2475 = vmatpush1.msra.mxu0 0.0
    %2476 = vmatprep.subr.mxu0 0.0
    %2477 = vmatpush1.msra.mxu0 0.0
    %2478 = vmatprep.subr.mxu0 0.0
    %2479 = vmatpush1.msra.mxu0 0.0
    %2480 = vmatprep.subr.mxu0 0.0
    %2481 = vmatpush1.msra.mxu0 0.0
    %2482 = vmatprep.subr.mxu0 0.0
    %2483 = vmatpush1.msra.mxu0 0.0
    %2484 = vmatprep.subr.mxu0 0.0
    %2485 = vmatpush1.msra.mxu0 0.0
    %2486 = vmatprep.subr.mxu0 0.0
    %2487 = vmatpush1.msra.mxu0 0.0
    %2488 = vmatprep.subr.mxu0 0.0
    %2489 = vmatpush1.msra.mxu0 0.0
    %2490 = vmatprep.subr.mxu0 0.0
    %2491 = vmatpush1.msra.mxu0 0.0
    %2492 = vmatprep.subr.mxu0 0.0
    %2493 = vmatpush1.msra.mxu0 0.0
    %2494 = vmatprep.subr.mxu0 0.0
    %2495 = vmatpush1.msra.mxu0 0.0
    %2496 = vmatprep.subr.mxu0 0.0
    %2497 = vmatpush1.msra.mxu0 0.0
    %2498 = vmatprep.subr.mxu0 0.0
    %2499 = vmatpush1.msra.mxu0 0.0
    %2500 = vmatprep.subr.mxu0 0.0
    %2501 = vmatpush1.msra.mxu0 0.0
    %2502 = vmatprep.subr.mxu0 0.0
    %2503 = vmatpush1.msra.mxu0 0.0
    %2504 = vmatprep.subr.mxu0 0.0
    %2505 = vmatpush1.msra.mxu0 0.0
    %2506 = vmatprep.subr.mxu0 0.0
    %2507 = vmatpush1.msra.mxu0 0.0
    %2508 = vmatprep.subr.mxu0 0.0
    %2509 = vmatpush1.msra.mxu0 0.0
    %2510 = vmatprep.subr.mxu0 0.0
    %2511 = vmatpush1.msra.mxu0 0.0
    %2512 = vmatprep.subr.mxu0 0.0
    %2513 = vmatpush1.msra.mxu0 0.0
    %2514 = vmatprep.mubr.f32.mxu0 0.0
    %2515 = vmatmul.mubr.f32.gmra.mrb[0].mxu0 %v2448
    %v2516 = vpop.f32.mrb[0].mxu0
    %v2517 = vadd.f32 %v2440, %v2516
    %v2518 = vpop.f32.mrb[0].mxu0
    %2519 = vdwg.mxu0
    %vm2520 = vcmask 9216
    %v2521 = vsel %vm2520, %v2517, -inf
    %2522 = vmax.xlane.f32.xlu0 %v2521
    %v2523 = vpop.xlane.xlu0 %2522
    %v2524 = vsub.f32 %v2517, %v2523
    %v2525 = vmul.f32 %v2524, 1.442695
    %v2526 = vpow.pop %v2525
    %v2527 = vsel %vm2520, %v2526, 0.0
    %2528 = vadd.xlane.f32.xlu0 %v2527
    %v2529 = vpop.xlane.xlu0 %2528
    %v2530 = vrcp.pop %v2529
    %v2531 = vmul.f32 %v2526, %v2530
    %2532 = vst.msk [vmem:[#allocation7] sm:$0x3] %vm2520, %v2531
    // Predicated region
    $region26: #{equiv_nophys_forward.1} parent=1 // pred_check
      _
    $region27: #{equiv_nophys_forward.1} parent=1 // pred_check_branch
      %2534 = sbr.rel (0) target = $region29
    $region28: #{equiv_nophys_forward.1} parent=1 // pred_region
      %s2536 = ssub.s32 32, 32
      %2537 = vsyncadd [#allocation4], %s2536
      %s2539 = sshll.u32 [#allocation7], 4
      %s2540 = int_to_ptr.vmem [resolvable:$true] %s2539
      %2542 = dma.vmem_to_hbm [thread:$0]  %s2540, 32, %s4, [#allocation4]
    $region29: #{equiv_nophys_forward.1} parent=1 // pred_fallthru
      _
    // Predicated region
    $region30: #{equiv_nophys_forward.1} parent=1 // pred_check
      _
    $region31: #{equiv_nophys_forward.1} parent=1 // pred_check_branch
      %2544 = sbr.rel (0) target = $region33
    $region32: #{equiv_nophys_forward.1} parent=1 // pred_region
      %2545 = dma.done [#allocation4], 32
    $region33: #{equiv_nophys_forward.1} parent=1 // pred_fallthru
      _
    %2546 = vsyncpa [#allocation3], 1
    %2547 = vsyncpa [#allocation6], 1
    %2548 = vsyncpa [#allocation4], 1

</llo_original>
